<compile_context>
chip_gen: v5e
topology: v5e:2x2
jax: 0.10.0
libtpu: 0.0.40
codegen_flags: <defaults>
</compile_context>

<pallas_src>
import math

import jax
import jax.numpy as jnp
import numpy as np
from jax import lax
from jax.experimental import pallas as pl
from jax.experimental.pallas import tpu as pltpu

# ----- static hyper-params (the torch `args` namespace) ----------------------
N_AGENTS = 2
BS = 4                         # batch of envs -> MB = 8 fills a sublane tile
MB = BS * N_AGENTS             # mini-batch = bs * n_agents
T_STEPS = 8                    # rollout length handled by one pallas_call
INPUT_DIM = 24                 # per-agent observation dim (input_shape)
GEN_HIDDEN = 32                # args.generator_hidden_dim
LATENT_DIM = 8                 # args.latent_dim
RNN_HIDDEN = 32                # args.rnn_hidden_dim
N_ACTIONS = 6                  # args.n_actions
STATE_DIM = 16                 # int(np.prod(args.state_shape))
VAR_FLOOR = 0.002              # args.var_floor
LOG_VAR_FLOOR = math.log(VAR_FLOOR)
LOSS_ENTROPY_W = 0.001         # args.loss_entropy_weight
LOSS_KL_W = 0.0001             # args.loss_kl_weight
CONSENSUS_W = 0.001            # args.consensus_loss_weight
BN_EPS = 1e-5
HALF_LOG_2PI = 0.5 * math.log(2.0 * math.pi)
LANES = 128
ENT_CONST = MB * LATENT_DIM * (0.5 + HALF_LOG_2PI)   # constant part of sum(entropy)

# ----- weight-slab row offsets (all multiples of 8) ---------------------------
R_WA = 0      # (24, 64)  x -> [embed L1 z (0:32) | fc1 x-part (32:64)]
R_WB_H = 24   # (32,128)  h -> [GRU gh r|z|n (0:96) | infer L1 h-part (96:128)]
R_WB_S = 56   # (16,128)  state -> [zeros (0:96) | infer L1 state-part (96:128)]
R_REP = 72    # (MB, BS)  per-agent state row-repeat matrix
R_W2 = 80     # (64, 32)  fused stage-2: [z|zi] -> [lv_e | mu_e | lv_s | mu_s]
R_WF1L = 144  # ( 8, 32)  fc1 latent part
R_WIH = 152   # (32, 96)  GRU input->gates (r|z|n)
R_WFC2 = 184  # (32, 38)  fc2 augmented with identity (emits [q | h])
R_G = 216     # (BS, MB)  consensus per-group agent-sum matrix
W_ROWS = 224

# ----- bias/scale-slab row indices --------------------------------------------
B_A, B_B, B_GAMMA, B_BETA, B_2, B_GRUI, B_FC2 = range(7)
B_ROWS = 8

# ----- packed-output lane layout ------------------------------------------------
OUT_Q0 = 0
OUT_H0 = N_ACTIONS                               # 6:38
OUT_LOSS = N_ACTIONS + RNN_HIDDEN                # lane 38


# ----- the fused kernel ----------------------------------------------------------
def _agent_kernel(x_ref, state_ref, eps_ref, h0_ref, w_ref, b_ref, out_ref, h_scr):
    f32 = jnp.float32
    H = RNN_HIDDEN
    t = pl.program_id(0)

    def mm(a, b):
        return jnp.dot(a, b, preferred_element_type=f32)

    @pl.when(t == 0)
    def _():                                    # seed the carried hidden state
        h_scr[...] = h0_ref[...]

    x_in = x_ref[0]                             # (MB, 24)
    st_small = state_ref[0]                     # (BS, 16)
    eps = eps_ref[0]                            # (MB, 8)
    h_in = h_scr[...]                           # (MB, 32)

    # per-agent state repeat via the MXU (no sublane shuffles)
    st = mm(w_ref[R_REP:R_REP + MB, 0:BS], st_small)          # (MB, 16)

    # ---- fused stage-1 matmuls (lane-concatenated outputs) ---------------------
    outA = mm(x_in, w_ref[R_WA:R_WA + 24, :]) + b_ref[B_A:B_A + 1, :]
    outB = (mm(h_in, w_ref[R_WB_H:R_WB_H + 32, :])
            + mm(st, w_ref[R_WB_S:R_WB_S + 16, :])
            + b_ref[B_B:B_B + 1, :])
    # outA lanes: 0:32 embed-L1 pre-act, 32:64 fc1 x-part (+bf1)
    # outB lanes: 0:96 GRU gh (r|z|n, +bhh_n), 96:128 inference-L1 pre-act (+bi1)

    # ---- one BatchNorm1d over the lane-concatenated [z | zi] (training mode) ---
    cat1 = jnp.concatenate([outA[:, 0:GEN_HIDDEN], outB[:, 96:128]], axis=-1)
    mu1 = jnp.mean(cat1, axis=0, keepdims=True)
    d1 = cat1 - mu1
    var1 = jnp.mean(d1 * d1, axis=0, keepdims=True)            # two-pass, biased
    bn1 = (d1 * lax.rsqrt(var1 + BN_EPS) * b_ref[B_GAMMA:B_GAMMA + 1, 0:64]
           + b_ref[B_BETA:B_BETA + 1, 0:64])
    act1 = jnp.where(bn1 > 0, bn1, 0.01 * bn1)                 # LeakyReLU(0.01)

    # ---- fused stage-2: one matmul emits [lv_e | mu_e | lv_s | mu_s] -----------
    fused2 = mm(act1, w_ref[R_W2:R_W2 + 64, :]) + b_ref[B_2:B_2 + 1, :]
    lv_e = jnp.maximum(fused2[:, 0:LATENT_DIM], LOG_VAR_FLOOR)         # log-var
    mu_e = fused2[:, LATENT_DIM:2 * LATENT_DIM]
    lv_s = jnp.maximum(fused2[:, 2 * LATENT_DIM:3 * LATENT_DIM], LOG_VAR_FLOOR)
    mu_s = fused2[:, 3 * LATENT_DIM:4 * LATENT_DIM]

    std_e = jnp.exp(0.5 * lv_e)                 # lv_e at lanes 0:8 -> aligned w/ eps
    latent = mu_e + std_e * eps                 # Normal(mu, std).rsample()

    # ---- x = relu(fc1(cat(inputs, latent))) -------------------------------------
    xf = outA[:, GEN_HIDDEN:2 * GEN_HIDDEN] + mm(latent,
                                                 w_ref[R_WF1L:R_WF1L + 8, 0:RNN_HIDDEN])
    xr = jnp.maximum(xf, 0.0)

    # ---- GRUCell (gh already computed in outB; one (32->96) matmul here) --------
    gi = mm(xr, w_ref[R_WIH:R_WIH + 32, :]) + b_ref[B_GRUI:B_GRUI + 1, :]
    rz = jax.nn.sigmoid(gi[:, 0:2 * H] + outB[:, 0:2 * H])
    r = rz[:, 0:H]
    zg = rz[:, H:2 * H]
    n = jnp.tanh(gi[:, 2 * H:3 * H] + r * outB[:, 2 * H:3 * H])
    h = (1.0 - zg) * n + zg * h_in
    h_scr[...] = h                              # carry to the next timestep

    # ---- fc2 (identity-augmented weight packs [q | h] lane-dense) ---------------
    qh = mm(h, w_ref[R_WFC2:R_WFC2 + 32, :]) + b_ref[B_FC2:B_FC2 + 1, :]

    # ---- perception loss: entropy(embed) + KL(embed || state) -------------------
    var_e = std_e * std_e
    ent_sum = ENT_CONST + 0.5 * jnp.sum(lv_e)   # sum over batch & latent dims
    dm = mu_e - mu_s
    kl = 0.5 * (lv_s - lv_e) + (var_e + dm * dm) * (0.5 * jnp.exp(-lv_s)) - 0.5
    ploss = (LOSS_ENTROPY_W * ent_sum + LOSS_KL_W * jnp.sum(kl)) * (1.0 / MB)

    # ---- consensus loss (closed form, per-group sums on the MXU) ----------------
    Gb = w_ref[R_G:R_G + BS, 0:MB]              # (BS, MB) group-sum matrix
    s1 = mm(Gb, latent)
    s2 = mm(Gb, latent * latent)
    csum = jnp.sum(2.0 * N_AGENTS * s2 - 2.0 * s1 * s1)
    closs = csum * (1.0 / (LATENT_DIM * MB))

    total = ploss + closs * CONSENSUS_W

    # ---- single merged lane-dense store: [q(0:6) | h(6:38) | loss(38)] ----------
    lane = lax.broadcasted_iota(jnp.int32, (MB, LANES), 1)
    out_ref[0] = jnp.where(lane == OUT_LOSS, total, qh)


# ----- parameter construction (deterministic, torch-like uniform init) ----------
def _linear(key, fan_in, fan_out):
    kw, kb = jax.random.split(key)
    bound = 1.0 / math.sqrt(fan_in)
    w = jax.random.uniform(kw, (fan_in, fan_out), jnp.float32, -bound, bound)
    b = jax.random.uniform(kb, (1, fan_out), jnp.float32, -bound, bound)
    return w, b


def make_params(key):
    ks = jax.random.split(key, 7)
    p = {}
    p["we1"], p["be1"] = _linear(ks[0], INPUT_DIM, GEN_HIDDEN)
    p["ge"] = jnp.ones((1, GEN_HIDDEN), jnp.float32)
    p["bbe"] = jnp.zeros((1, GEN_HIDDEN), jnp.float32)
    p["we2"], p["be2"] = _linear(ks[1], GEN_HIDDEN, 2 * LATENT_DIM)
    p["wf1"], p["bf1"] = _linear(ks[2], INPUT_DIM + LATENT_DIM, RNN_HIDDEN)

    bound = 1.0 / math.sqrt(RNN_HIDDEN)
    kih, khh, kbih, kbhh = jax.random.split(ks[3], 4)
    p["wih"] = jax.random.uniform(kih, (RNN_HIDDEN, 3 * RNN_HIDDEN), jnp.float32, -bound, bound)
    p["whh"] = jax.random.uniform(khh, (RNN_HIDDEN, 3 * RNN_HIDDEN), jnp.float32, -bound, bound)
    p["bih"] = jax.random.uniform(kbih, (1, 3 * RNN_HIDDEN), jnp.float32, -bound, bound)
    p["bhh"] = jax.random.uniform(kbhh, (1, 3 * RNN_HIDDEN), jnp.float32, -bound, bound)

    p["wfc2"], p["bfc2"] = _linear(ks[4], RNN_HIDDEN, N_ACTIONS)
    p["wi1"], p["bi1"] = _linear(ks[5], RNN_HIDDEN + STATE_DIM, GEN_HIDDEN)
    p["gi"] = jnp.ones((1, GEN_HIDDEN), jnp.float32)
    p["bbi"] = jnp.zeros((1, GEN_HIDDEN), jnp.float32)
    p["wi2"], p["bi2"] = _linear(ks[6], GEN_HIDDEN, 2 * LATENT_DIM)
    return p


# ----- one-time parameter packing into two VMEM slabs -----------------------------
def pack_params(p):
    wslab = np.zeros((W_ROWS, LANES), np.float32)

    def put(r0, c0, w):
        w = np.asarray(w, np.float32)
        wslab[r0:r0 + w.shape[0], c0:c0 + w.shape[1]] = w

    # stage-1 A: x -> [embed z | fc1 x-part]
    put(R_WA, 0, p["we1"])
    put(R_WA, GEN_HIDDEN, p["wf1"][:INPUT_DIM])
    # stage-1 B: h -> [GRU gh | infer zi_h], state -> [0 | infer zi_s]
    put(R_WB_H, 0, p["whh"])
    put(R_WB_H, 96, p["wi1"][:RNN_HIDDEN])
    put(R_WB_S, 96, p["wi1"][RNN_HIDDEN:])
    # per-agent state repeat matrix (MB, BS)
    put(R_REP, 0, np.kron(np.eye(BS, dtype=np.float32),
                          np.ones((N_AGENTS, 1), np.float32)))
    # fused stage-2: [z | zi](64) -> [lv_e | mu_e | lv_s | mu_s](32)
    we2 = np.asarray(p["we2"], np.float32)
    wi2 = np.asarray(p["wi2"], np.float32)
    put(R_W2, 0, we2[:, LATENT_DIM:])                 # lv_e
    put(R_W2, LATENT_DIM, we2[:, :LATENT_DIM])        # mu_e
    put(R_W2 + GEN_HIDDEN, 2 * LATENT_DIM, wi2[:, LATENT_DIM:])    # lv_s
    put(R_W2 + GEN_HIDDEN, 3 * LATENT_DIM, wi2[:, :LATENT_DIM])    # mu_s
    # fc1 latent part
    put(R_WF1L, 0, p["wf1"][INPUT_DIM:])
    # GRU input->gates
    put(R_WIH, 0, p["wih"])
    # fc2 augmented: lanes 0:6 = wfc2, lanes 6:38 = identity (emits h next to q)
    put(R_WFC2, 0, p["wfc2"])
    put(R_WFC2, N_ACTIONS, np.eye(RNN_HIDDEN, dtype=np.float32))
    # consensus per-group agent-sum matrix (BS, MB)
    put(R_G, 0, np.kron(np.eye(BS, dtype=np.float32),
                        np.ones((1, N_AGENTS), np.float32)))

    bslab = np.zeros((B_ROWS, LANES), np.float32)

    def putb(r, c0, v):
        v = np.asarray(v, np.float32).reshape(-1)
        bslab[r, c0:c0 + v.shape[0]] = v

    H = RNN_HIDDEN
    bih = np.asarray(p["bih"], np.float32).reshape(-1)
    bhh = np.asarray(p["bhh"], np.float32).reshape(-1)
    putb(B_A, 0, p["be1"])
    putb(B_A, GEN_HIDDEN, p["bf1"])
    putb(B_B, 2 * H, bhh[2 * H:3 * H])               # b_hn only (r/z biases in GRUI)
    putb(B_B, 96, p["bi1"])
    putb(B_GAMMA, 0, p["ge"])
    putb(B_GAMMA, GEN_HIDDEN, p["gi"])
    putb(B_BETA, 0, p["bbe"])
    putb(B_BETA, GEN_HIDDEN, p["bbi"])
    be2 = np.asarray(p["be2"], np.float32).reshape(-1)
    bi2 = np.asarray(p["bi2"], np.float32).reshape(-1)
    putb(B_2, 0, be2[LATENT_DIM:])
    putb(B_2, LATENT_DIM, be2[:LATENT_DIM])
    putb(B_2, 2 * LATENT_DIM, bi2[LATENT_DIM:])
    putb(B_2, 3 * LATENT_DIM, bi2[:LATENT_DIM])
    putb(B_GRUI, 0, bih[:2 * H] + bhh[:2 * H])       # r,z biases pre-summed
    putb(B_GRUI, 2 * H, bih[2 * H:3 * H])            # b_in
    putb(B_FC2, 0, p["bfc2"])                        # lanes 6:38 stay zero (h pass)
    return jnp.asarray(wslab), jnp.asarray(bslab)


# ----- wrapper: one pallas_call runs the whole T-step rollout ---------------------
@jax.jit
def rnn_agent_rollout(inputs_seq, h0, state_seq, eps_seq, wslab, bslab):
    T = inputs_seq.shape[0]
    grid_spec = pltpu.PrefetchScalarGridSpec(
        num_scalar_prefetch=0,
        grid=(T,),
        in_specs=[
            pl.BlockSpec((1, MB, INPUT_DIM), lambda t: (t, 0, 0)),    # inputs_t
            pl.BlockSpec((1, BS, STATE_DIM), lambda t: (t, 0, 0)),    # state_t
            pl.BlockSpec((1, MB, LATENT_DIM), lambda t: (t, 0, 0)),   # eps_t
            pl.BlockSpec((MB, RNN_HIDDEN), lambda t: (0, 0)),         # h0 (resident)
            pl.BlockSpec((W_ROWS, LANES), lambda t: (0, 0)),          # weights (resident)
            pl.BlockSpec((B_ROWS, LANES), lambda t: (0, 0)),          # biases (resident)
        ],
        out_specs=pl.BlockSpec((1, MB, LANES), lambda t: (t, 0, 0)),
        scratch_shapes=[pltpu.VMEM((MB, RNN_HIDDEN), jnp.float32)],   # carried h
    )
    out = pl.pallas_call(
        _agent_kernel,
        out_shape=jax.ShapeDtypeStruct((T, MB, LANES), jnp.float32),
        grid_spec=grid_spec,
        compiler_params=pltpu.CompilerParams(dimension_semantics=("arbitrary",)),
    )(inputs_seq, state_seq, eps_seq, h0, wslab, bslab)
    q = out[:, :, OUT_Q0:OUT_Q0 + N_ACTIONS]
    h = out[:, :, OUT_H0:OUT_H0 + RNN_HIDDEN]
    loss = out[:, 0, OUT_LOSS]
    return q, h, loss


# ----- pure-JAX reference (mirrors the torch forward, stepped over time) ----------
def reference_step(inputs, h_in, state, eps, p):
    def lrelu(v):
        return jnp.where(v > 0, v, 0.01 * v)

    def bn(v, g, b):
        mu = v.mean(0, keepdims=True)
        var = ((v - mu) ** 2).mean(0, keepdims=True)
        return (v - mu) / jnp.sqrt(var + BN_EPS) * g + b

    H = RNN_HIDDEN
    z = lrelu(bn(inputs @ p["we1"] + p["be1"], p["ge"], p["bbe"]))
    lat2 = z @ p["we2"] + p["be2"]
    mu_e = lat2[:, :LATENT_DIM]
    var_e = jnp.maximum(jnp.exp(lat2[:, LATENT_DIM:]), VAR_FLOOR)
    std_e = jnp.sqrt(var_e)
    latent = mu_e + std_e * eps

    x = jnp.maximum(jnp.concatenate([inputs, latent], axis=-1) @ p["wf1"] + p["bf1"], 0.0)
    gi = x @ p["wih"] + p["bih"]
    gh = h_in @ p["whh"] + p["bhh"]
    r = jax.nn.sigmoid(gi[:, :H] + gh[:, :H])
    zg = jax.nn.sigmoid(gi[:, H:2 * H] + gh[:, H:2 * H])
    n = jnp.tanh(gi[:, 2 * H:] + r * gh[:, 2 * H:])
    h = (1.0 - zg) * n + zg * h_in
    q = h @ p["wfc2"] + p["bfc2"]

    st = jnp.broadcast_to(state[:, None, :], (BS, N_AGENTS, STATE_DIM)).reshape(MB, STATE_DIM)
    zi = lrelu(bn(jnp.concatenate([h_in, st], axis=-1) @ p["wi1"] + p["bi1"],
                  p["gi"], p["bbi"]))
    ls2 = zi @ p["wi2"] + p["bi2"]
    mu_s = ls2[:, :LATENT_DIM]
    var_s = jnp.maximum(jnp.exp(ls2[:, LATENT_DIM:]), VAR_FLOOR)
    std_s = jnp.sqrt(var_s)

    ent = 0.5 + HALF_LOG_2PI + jnp.log(std_e)
    kl = (jnp.log(std_s) - jnp.log(std_e)
          + (var_e + (mu_e - mu_s) ** 2) / (2.0 * var_s) - 0.5)
    ploss = LOSS_ENTROPY_W * jnp.mean(ent.sum(-1)) + LOSS_KL_W * jnp.mean(kl.sum(-1))

    lf = latent.reshape(BS, N_AGENTS, LATENT_DIM)   # torch-style explicit roll loop
    mv = lf
    closs = jnp.zeros_like(lf)
    for _ in range(N_AGENTS):
        mv = jnp.concatenate([mv[:, -1:, :], mv[:, :-1, :]], axis=1)
        closs = closs + (lf - mv) ** 2 / LATENT_DIM
    closs = closs.sum() / MB
    return q, h, ploss + closs * CONSENSUS_W


def reference_rollout(inputs_seq, h0, state_seq, eps_seq, p):
    qs, hs, ls = [], [], []
    h = h0
    for t in range(inputs_seq.shape[0]):
        q, h, l = reference_step(inputs_seq[t], h, state_seq[t], eps_seq[t], p)
        qs.append(q)
        hs.append(h)
        ls.append(l)
    return jnp.stack(qs), jnp.stack(hs), jnp.stack(ls)


if __name__ == "__main__":
    key = jax.random.PRNGKey(0)
    k_in, k_h, k_st, k_eps, k_par = jax.random.split(key, 5)

    inputs_seq = jax.random.normal(k_in, (T_STEPS, MB, INPUT_DIM), jnp.float32)
    h0 = 0.1 * jax.random.normal(k_h, (MB, RNN_HIDDEN), jnp.float32)
    state_seq = jax.random.normal(k_st, (T_STEPS, BS, STATE_DIM), jnp.float32)
    eps_seq = jax.random.normal(k_eps, (T_STEPS, MB, LATENT_DIM), jnp.float32)

    params = make_params(k_par)
    wslab, bslab = pack_params(params)    # built once, resident for the whole rollout

    q, h, extra_loss = jax.block_until_ready(
        rnn_agent_rollout(inputs_seq, h0, state_seq, eps_seq, wslab, bslab))

    q_r, h_r, loss_r = reference_rollout(inputs_seq, h0, state_seq, eps_seq, params)
    np.testing.assert_allclose(np.asarray(q), np.asarray(q_r), rtol=5e-4, atol=5e-4)
    np.testing.assert_allclose(np.asarray(h), np.asarray(h_r), rtol=5e-4, atol=5e-4)
    np.testing.assert_allclose(np.asarray(extra_loss), np.asarray(loss_r),
                               rtol=5e-4, atol=5e-4)
    print("KERNEL_OK")
</pallas_src>

<mosaic_0001>
module attributes {stable_mosaic.version = 11 : i64} {
  func.func @_agent_kernel(%arg0: i32, %arg1: memref<1x8x24xf32, #tpu.memory_space<vmem>>, %arg2: memref<1x4x16xf32, #tpu.memory_space<vmem>>, %arg3: memref<1x8x8xf32, #tpu.memory_space<vmem>>, %arg4: memref<8x32xf32, #tpu.memory_space<vmem>>, %arg5: memref<224x128xf32, #tpu.memory_space<vmem>>, %arg6: memref<8x128xf32, #tpu.memory_space<vmem>>, %arg7: memref<1x8x128xf32, #tpu.memory_space<vmem>>, %arg8: memref<8x32xf32, #tpu.memory_space<vmem>>) attributes {dimension_semantics = [#tpu.dimension_semantics<arbitrary>], iteration_bounds = array<i64: 8>, scalar_prefetch = 0 : i64, scratch_operands = 1 : i64, tpu.core_type = #tpu.core_type<tc>, window_params = [{transform_indices = @transform_0, window_bounds = array<i64: 1, 8, 24>}, {transform_indices = @transform_1, window_bounds = array<i64: 1, 4, 16>}, {transform_indices = @transform_2, window_bounds = array<i64: 1, 8, 8>}, {pipeline_mode = #tpu.pipeline_mode<synchronous>, transform_indices = @transform_3, window_bounds = array<i64: 8, 32>}, {pipeline_mode = #tpu.pipeline_mode<synchronous>, transform_indices = @transform_4, window_bounds = array<i64: 224, 128>}, {pipeline_mode = #tpu.pipeline_mode<synchronous>, transform_indices = @transform_5, window_bounds = array<i64: 8, 128>}, {transform_indices = @transform_6, window_bounds = array<i64: 1, 8, 128>}]} {
    %c0_i32 = arith.constant 0 : i32
    %0 = arith.cmpi eq, %arg0, %c0_i32 : i32
    %1 = arith.extui %0 : i1 to i32
    %c0_i32_0 = arith.constant 0 : i32
    %2 = arith.cmpi ne, %1, %c0_i32_0 : i32
    scf.if %2 {
      %c0_72 = arith.constant 0 : index
      %c0_73 = arith.constant 0 : index
      %165 = vector.load %arg4[%c0_72, %c0_73] : memref<8x32xf32, #tpu.memory_space<vmem>>, vector<8x32xf32>
      %c0_74 = arith.constant 0 : index
      %c0_75 = arith.constant 0 : index
      %166 = vector.load %arg8[%c0_74, %c0_75] : memref<8x32xf32, #tpu.memory_space<vmem>>, vector<8x32xf32>
      tpu.vector_store %arg8[%c0_74, %c0_75], %165 {strides = array<i32>} : memref<8x32xf32, #tpu.memory_space<vmem>>, vector<8x32xf32>,
    } else {
    }
    %c0 = arith.constant 0 : index
    %c0_1 = arith.constant 0 : index
    %c0_2 = arith.constant 0 : index
    %3 = vector.load %arg1[%c0, %c0_1, %c0_2] : memref<1x8x24xf32, #tpu.memory_space<vmem>>, vector<1x8x24xf32>
    %4 = vector.shape_cast %3 : vector<1x8x24xf32> to vector<8x24xf32>
    %c0_3 = arith.constant 0 : index
    %c0_4 = arith.constant 0 : index
    %c0_5 = arith.constant 0 : index
    %5 = vector.load %arg2[%c0_3, %c0_4, %c0_5] : memref<1x4x16xf32, #tpu.memory_space<vmem>>, vector<1x4x16xf32>
    %6 = vector.shape_cast %5 : vector<1x4x16xf32> to vector<4x16xf32>
    %c0_6 = arith.constant 0 : index
    %c0_7 = arith.constant 0 : index
    %c0_8 = arith.constant 0 : index
    %7 = vector.load %arg3[%c0_6, %c0_7, %c0_8] : memref<1x8x8xf32, #tpu.memory_space<vmem>>, vector<1x8x8xf32>
    %8 = vector.shape_cast %7 : vector<1x8x8xf32> to vector<8x8xf32>
    %c0_9 = arith.constant 0 : index
    %c0_10 = arith.constant 0 : index
    %9 = vector.load %arg8[%c0_9, %c0_10] : memref<8x32xf32, #tpu.memory_space<vmem>>, vector<8x32xf32>
    %c72 = arith.constant 72 : index
    %c0_11 = arith.constant 0 : index
    %10 = vector.load %arg5[%c72, %c0_11] : memref<224x128xf32, #tpu.memory_space<vmem>>, vector<8x4xf32>
    %cst = arith.constant dense<0.000000e+00> : vector<8x16xf32>
    %11 = tpu.matmul %10, %6, %cst {dimension_numbers = #tpu.dot_dimension_numbers<[1], [0], [0], [1], [0, 0, 1, 1], [], []>} : vector<8x4xf32>, vector<4x16xf32>, vector<8x16xf32> -> vector<8x16xf32>
    %c0_12 = arith.constant 0 : index
    %c0_13 = arith.constant 0 : index
    %12 = vector.load %arg5[%c0_12, %c0_13] : memref<224x128xf32, #tpu.memory_space<vmem>>, vector<24x128xf32>
    %cst_14 = arith.constant dense<0.000000e+00> : vector<8x128xf32>
    %13 = tpu.matmul %4, %12, %cst_14 {dimension_numbers = #tpu.dot_dimension_numbers<[1], [0], [0], [1], [0, 0, 1, 1], [], []>} : vector<8x24xf32>, vector<24x128xf32>, vector<8x128xf32> -> vector<8x128xf32>
    %c0_15 = arith.constant 0 : index
    %c0_16 = arith.constant 0 : index
    %14 = vector.load %arg6[%c0_15, %c0_16] : memref<8x128xf32, #tpu.memory_space<vmem>>, vector<1x128xf32>
    %15 = vector.broadcast %14 : vector<1x128xf32> to vector<8x128xf32>
    %16 = arith.addf %13, %15 : vector<8x128xf32>
    %c24 = arith.constant 24 : index
    %c0_17 = arith.constant 0 : index
    %17 = vector.load %arg5[%c24, %c0_17] : memref<224x128xf32, #tpu.memory_space<vmem>>, vector<32x128xf32>
    %cst_18 = arith.constant dense<0.000000e+00> : vector<8x128xf32>
    %18 = tpu.matmul %9, %17, %cst_18 {dimension_numbers = #tpu.dot_dimension_numbers<[1], [0], [0], [1], [0, 0, 1, 1], [], []>} : vector<8x32xf32>, vector<32x128xf32>, vector<8x128xf32> -> vector<8x128xf32>
    %c56 = arith.constant 56 : index
    %c0_19 = arith.constant 0 : index
    %19 = vector.load %arg5[%c56, %c0_19] : memref<224x128xf32, #tpu.memory_space<vmem>>, vector<16x128xf32>
    %cst_20 = arith.constant dense<0.000000e+00> : vector<8x128xf32>
    %20 = tpu.matmul %11, %19, %cst_20 {dimension_numbers = #tpu.dot_dimension_numbers<[1], [0], [0], [1], [0, 0, 1, 1], [], []>} : vector<8x16xf32>, vector<16x128xf32>, vector<8x128xf32> -> vector<8x128xf32>
    %21 = arith.addf %18, %20 : vector<8x128xf32>
    %c1 = arith.constant 1 : index
    %c0_21 = arith.constant 0 : index
    %22 = vector.load %arg6[%c1, %c0_21] : memref<8x128xf32, #tpu.memory_space<vmem>>, vector<1x128xf32>
    %23 = vector.broadcast %22 : vector<1x128xf32> to vector<8x128xf32>
    %24 = arith.addf %21, %23 : vector<8x128xf32>
    %25 = vector.extract_strided_slice %16 {offsets = [0, 0], sizes = [8, 32], strides = [1, 1]} : vector<8x128xf32> to vector<8x32xf32>
    %26 = vector.extract_strided_slice %24 {offsets = [0, 96], sizes = [8, 32], strides = [1, 1]} : vector<8x128xf32> to vector<8x32xf32>
    %27 = tpu.concatenate %25, %26 in 1 : vector<8x32xf32>, vector<8x32xf32> -> vector<8x64xf32>
    %cst_22 = arith.constant dense<0.000000e+00> : vector<64xf32>
    %28 = vector.multi_reduction <add>, %27, %cst_22 [0] : vector<8x64xf32> to vector<64xf32>
    %29 = vector.shape_cast %28 : vector<64xf32> to vector<1x64xf32>
    %cst_23 = arith.constant 8.000000e+00 : f32
    %30 = vector.broadcast %cst_23 : f32 to vector<1x64xf32>
    %31 = arith.divf %29, %30 : vector<1x64xf32>
    %32 = vector.broadcast %31 : vector<1x64xf32> to vector<8x64xf32>
    %33 = arith.subf %27, %32 : vector<8x64xf32>
    %34 = arith.mulf %33, %33 : vector<8x64xf32>
    %cst_24 = arith.constant dense<0.000000e+00> : vector<64xf32>
    %35 = vector.multi_reduction <add>, %34, %cst_24 [0] : vector<8x64xf32> to vector<64xf32>
    %36 = vector.shape_cast %35 : vector<64xf32> to vector<1x64xf32>
    %cst_25 = arith.constant 8.000000e+00 : f32
    %37 = vector.broadcast %cst_25 : f32 to vector<1x64xf32>
    %38 = arith.divf %36, %37 : vector<1x64xf32>
    %cst_26 = arith.constant 9.99999974E-6 : f32
    %39 = vector.broadcast %cst_26 : f32 to vector<1x64xf32>
    %40 = arith.addf %38, %39 : vector<1x64xf32>
    %41 = math.rsqrt %40 : vector<1x64xf32>
    %42 = vector.broadcast %41 : vector<1x64xf32> to vector<8x64xf32>
    %43 = arith.mulf %33, %42 : vector<8x64xf32>
    %c2 = arith.constant 2 : index
    %c0_27 = arith.constant 0 : index
    %44 = vector.load %arg6[%c2, %c0_27] : memref<8x128xf32, #tpu.memory_space<vmem>>, vector<1x64xf32>
    %45 = vector.broadcast %44 : vector<1x64xf32> to vector<8x64xf32>
    %46 = arith.mulf %43, %45 : vector<8x64xf32>
    %c3 = arith.constant 3 : index
    %c0_28 = arith.constant 0 : index
    %47 = vector.load %arg6[%c3, %c0_28] : memref<8x128xf32, #tpu.memory_space<vmem>>, vector<1x64xf32>
    %48 = vector.broadcast %47 : vector<1x64xf32> to vector<8x64xf32>
    %49 = arith.addf %46, %48 : vector<8x64xf32>
    %cst_29 = arith.constant 0.000000e+00 : f32
    %50 = vector.broadcast %cst_29 : f32 to vector<8x64xf32>
    %51 = arith.cmpf ogt, %49, %50 : vector<8x64xf32>
    %cst_30 = arith.constant 0.00999999977 : f32
    %52 = vector.broadcast %cst_30 : f32 to vector<8x64xf32>
    %53 = arith.mulf %52, %49 : vector<8x64xf32>
    %54 = arith.select %51, %49, %53 : vector<8x64xi1>, vector<8x64xf32>
    %c80 = arith.constant 80 : index
    %c0_31 = arith.constant 0 : index
    %55 = vector.load %arg5[%c80, %c0_31] : memref<224x128xf32, #tpu.memory_space<vmem>>, vector<64x128xf32>
    %cst_32 = arith.constant dense<0.000000e+00> : vector<8x128xf32>
    %56 = tpu.matmul %54, %55, %cst_32 {dimension_numbers = #tpu.dot_dimension_numbers<[1], [0], [0], [1], [0, 0, 1, 1], [], []>} : vector<8x64xf32>, vector<64x128xf32>, vector<8x128xf32> -> vector<8x128xf32>
    %c4 = arith.constant 4 : index
    %c0_33 = arith.constant 0 : index
    %57 = vector.load %arg6[%c4, %c0_33] : memref<8x128xf32, #tpu.memory_space<vmem>>, vector<1x128xf32>
    %58 = vector.broadcast %57 : vector<1x128xf32> to vector<8x128xf32>
    %59 = arith.addf %56, %58 : vector<8x128xf32>
    %60 = vector.extract_strided_slice %59 {offsets = [0, 0], sizes = [8, 8], strides = [1, 1]} : vector<8x128xf32> to vector<8x8xf32>
    %cst_34 = arith.constant -6.21460819 : f32
    %61 = vector.broadcast %cst_34 : f32 to vector<8x8xf32>
    %62 = arith.maximumf %60, %61 : vector<8x8xf32>
    %63 = vector.extract_strided_slice %59 {offsets = [0, 8], sizes = [8, 8], strides = [1, 1]} : vector<8x128xf32> to vector<8x8xf32>
    %64 = vector.extract_strided_slice %59 {offsets = [0, 16], sizes = [8, 8], strides = [1, 1]} : vector<8x128xf32> to vector<8x8xf32>
    %cst_35 = arith.constant -6.21460819 : f32
    %65 = vector.broadcast %cst_35 : f32 to vector<8x8xf32>
    %66 = arith.maximumf %64, %65 : vector<8x8xf32>
    %67 = vector.extract_strided_slice %59 {offsets = [0, 24], sizes = [8, 8], strides = [1, 1]} : vector<8x128xf32> to vector<8x8xf32>
    %cst_36 = arith.constant 5.000000e-01 : f32
    %68 = vector.broadcast %cst_36 : f32 to vector<8x8xf32>
    %69 = arith.mulf %68, %62 : vector<8x8xf32>
    %70 = math.exp %69 : vector<8x8xf32>
    %71 = arith.mulf %70, %8 : vector<8x8xf32>
    %72 = arith.addf %63, %71 : vector<8x8xf32>
    %73 = vector.extract_strided_slice %16 {offsets = [0, 32], sizes = [8, 32], strides = [1, 1]} : vector<8x128xf32> to vector<8x32xf32>
    %c144 = arith.constant 144 : index
    %c0_37 = arith.constant 0 : index
    %74 = vector.load %arg5[%c144, %c0_37] : memref<224x128xf32, #tpu.memory_space<vmem>>, vector<8x32xf32>
    %cst_38 = arith.constant dense<0.000000e+00> : vector<8x32xf32>
    %75 = tpu.matmul %72, %74, %cst_38 {dimension_numbers = #tpu.dot_dimension_numbers<[1], [0], [0], [1], [0, 0, 1, 1], [], []>} : vector<8x8xf32>, vector<8x32xf32>, vector<8x32xf32> -> vector<8x32xf32>
    %76 = arith.addf %73, %75 : vector<8x32xf32>
    %cst_39 = arith.constant 0.000000e+00 : f32
    %77 = vector.broadcast %cst_39 : f32 to vector<8x32xf32>
    %78 = arith.maximumf %76, %77 : vector<8x32xf32>
    %c152 = arith.constant 152 : index
    %c0_40 = arith.constant 0 : index
    %79 = vector.load %arg5[%c152, %c0_40] : memref<224x128xf32, #tpu.memory_space<vmem>>, vector<32x128xf32>
    %cst_41 = arith.constant dense<0.000000e+00> : vector<8x128xf32>
    %80 = tpu.matmul %78, %79, %cst_41 {dimension_numbers = #tpu.dot_dimension_numbers<[1], [0], [0], [1], [0, 0, 1, 1], [], []>} : vector<8x32xf32>, vector<32x128xf32>, vector<8x128xf32> -> vector<8x128xf32>
    %c5 = arith.constant 5 : index
    %c0_42 = arith.constant 0 : index
    %81 = vector.load %arg6[%c5, %c0_42] : memref<8x128xf32, #tpu.memory_space<vmem>>, vector<1x128xf32>
    %82 = vector.broadcast %81 : vector<1x128xf32> to vector<8x128xf32>
    %83 = arith.addf %80, %82 : vector<8x128xf32>
    %84 = vector.extract_strided_slice %83 {offsets = [0, 0], sizes = [8, 64], strides = [1, 1]} : vector<8x128xf32> to vector<8x64xf32>
    %85 = vector.extract_strided_slice %24 {offsets = [0, 0], sizes = [8, 64], strides = [1, 1]} : vector<8x128xf32> to vector<8x64xf32>
    %86 = arith.addf %84, %85 : vector<8x64xf32>
    %87 = arith.negf %86 : vector<8x64xf32>
    %88 = math.exp %87 : vector<8x64xf32>
    %cst_43 = arith.constant 1.000000e+00 : f32
    %89 = vector.broadcast %cst_43 : f32 to vector<8x64xf32>
    %90 = arith.addf %89, %88 : vector<8x64xf32>
    %91 = arith.divf %89, %90 : vector<8x64xf32>
    %92 = vector.extract_strided_slice %91 {offsets = [0, 0], sizes = [8, 32], strides = [1, 1]} : vector<8x64xf32> to vector<8x32xf32>
    %93 = vector.extract_strided_slice %91 {offsets = [0, 32], sizes = [8, 32], strides = [1, 1]} : vector<8x64xf32> to vector<8x32xf32>
    %94 = vector.extract_strided_slice %83 {offsets = [0, 64], sizes = [8, 32], strides = [1, 1]} : vector<8x128xf32> to vector<8x32xf32>
    %95 = vector.extract_strided_slice %24 {offsets = [0, 64], sizes = [8, 32], strides = [1, 1]} : vector<8x128xf32> to vector<8x32xf32>
    %96 = arith.mulf %92, %95 : vector<8x32xf32>
    %97 = arith.addf %94, %96 : vector<8x32xf32>
    %98 = math.tanh %97 : vector<8x32xf32>
    %cst_44 = arith.constant 1.000000e+00 : f32
    %99 = vector.broadcast %cst_44 : f32 to vector<8x32xf32>
    %100 = arith.subf %99, %93 : vector<8x32xf32>
    %101 = arith.mulf %100, %98 : vector<8x32xf32>
    %102 = arith.mulf %93, %9 : vector<8x32xf32>
    %103 = arith.addf %101, %102 : vector<8x32xf32>
    %c0_45 = arith.constant 0 : index
    %c0_46 = arith.constant 0 : index
    %104 = vector.load %arg8[%c0_45, %c0_46] : memref<8x32xf32, #tpu.memory_space<vmem>>, vector<8x32xf32>
    tpu.vector_store %arg8[%c0_45, %c0_46], %103 {strides = array<i32>} : memref<8x32xf32, #tpu.memory_space<vmem>>, vector<8x32xf32>,
    %c184 = arith.constant 184 : index
    %c0_47 = arith.constant 0 : index
    %105 = vector.load %arg5[%c184, %c0_47] : memref<224x128xf32, #tpu.memory_space<vmem>>, vector<32x128xf32>
    %cst_48 = arith.constant dense<0.000000e+00> : vector<8x128xf32>
    %106 = tpu.matmul %103, %105, %cst_48 {dimension_numbers = #tpu.dot_dimension_numbers<[1], [0], [0], [1], [0, 0, 1, 1], [], []>} : vector<8x32xf32>, vector<32x128xf32>, vector<8x128xf32> -> vector<8x128xf32>
    %c6 = arith.constant 6 : index
    %c0_49 = arith.constant 0 : index
    %107 = vector.load %arg6[%c6, %c0_49] : memref<8x128xf32, #tpu.memory_space<vmem>>, vector<1x128xf32>
    %108 = vector.broadcast %107 : vector<1x128xf32> to vector<8x128xf32>
    %109 = arith.addf %106, %108 : vector<8x128xf32>
    %110 = arith.mulf %70, %70 : vector<8x8xf32>
    %111 = vector.shape_cast %62 : vector<8x8xf32> to vector<1x8x8xf32>
    %cst_50 = arith.constant dense<0.000000e+00> : vector<1xf32>
    %112 = vector.multi_reduction <add>, %111, %cst_50 [1, 2] : vector<1x8x8xf32> to vector<1xf32>
    %113 = vector.shape_cast %112 : vector<1xf32> to vector<1x1x1xf32>
    %114 = vector.extract %113[0, 0, 0] : f32 from vector<1x1x1xf32>
    %cst_51 = arith.constant 5.000000e-01 : f32
    %115 = arith.mulf %cst_51, %114 : f32
    %cst_52 = arith.constant 90.8120651 : f32
    %116 = arith.addf %cst_52, %115 : f32
    %117 = arith.subf %63, %67 : vector<8x8xf32>
    %118 = arith.subf %66, %62 : vector<8x8xf32>
    %cst_53 = arith.constant 5.000000e-01 : f32
    %119 = vector.broadcast %cst_53 : f32 to vector<8x8xf32>
    %120 = arith.mulf %119, %118 : vector<8x8xf32>
    %121 = arith.mulf %117, %117 : vector<8x8xf32>
    %122 = arith.addf %110, %121 : vector<8x8xf32>
    %cst_54 = arith.constant 0.000000e+00 : f32
    %123 = vector.broadcast %cst_54 : f32 to vector<8x8xf32>
    %124 = arith.subf %123, %66 : vector<8x8xf32>
    %125 = math.exp %124 : vector<8x8xf32>
    %cst_55 = arith.constant 5.000000e-01 : f32
    %126 = vector.broadcast %cst_55 : f32 to vector<8x8xf32>
    %127 = arith.mulf %126, %125 : vector<8x8xf32>
    %128 = arith.mulf %122, %127 : vector<8x8xf32>
    %129 = arith.addf %120, %128 : vector<8x8xf32>
    %cst_56 = arith.constant 5.000000e-01 : f32
    %130 = vector.broadcast %cst_56 : f32 to vector<8x8xf32>
    %131 = arith.subf %129, %130 : vector<8x8xf32>
    %cst_57 = arith.constant 1.000000e-03 : f32
    %132 = arith.mulf %cst_57, %116 : f32
    %133 = vector.shape_cast %131 : vector<8x8xf32> to vector<1x8x8xf32>
    %cst_58 = arith.constant dense<0.000000e+00> : vector<1xf32>
    %134 = vector.multi_reduction <add>, %133, %cst_58 [1, 2] : vector<1x8x8xf32> to vector<1xf32>
    %135 = vector.shape_cast %134 : vector<1xf32> to vector<1x1x1xf32>
    %136 = vector.extract %135[0, 0, 0] : f32 from vector<1x1x1xf32>
    %cst_59 = arith.constant 9.99999974E-5 : f32
    %137 = arith.mulf %cst_59, %136 : f32
    %138 = arith.addf %132, %137 : f32
    %cst_60 = arith.constant 1.250000e-01 : f32
    %139 = arith.mulf %138, %cst_60 : f32
    %c216 = arith.constant 216 : index
    %c0_61 = arith.constant 0 : index
    %140 = vector.load %arg5[%c216, %c0_61] : memref<224x128xf32, #tpu.memory_space<vmem>>, vector<4x8xf32>
    %cst_62 = arith.constant dense<0.000000e+00> : vector<4x8xf32>
    %141 = tpu.matmul %140, %72, %cst_62 {dimension_numbers = #tpu.dot_dimension_numbers<[1], [0], [0], [1], [0, 0, 1, 1], [], []>} : vector<4x8xf32>, vector<8x8xf32>, vector<4x8xf32> -> vector<4x8xf32>
    %142 = arith.mulf %72, %72 : vector<8x8xf32>
    %cst_63 = arith.constant dense<0.000000e+00> : vector<4x8xf32>
    %143 = tpu.matmul %140, %142, %cst_63 {dimension_numbers = #tpu.dot_dimension_numbers<[1], [0], [0], [1], [0, 0, 1, 1], [], []>} : vector<4x8xf32>, vector<8x8xf32>, vector<4x8xf32> -> vector<4x8xf32>
    %cst_64 = arith.constant 4.000000e+00 : f32
    %144 = vector.broadcast %cst_64 : f32 to vector<4x8xf32>
    %145 = arith.mulf %144, %143 : vector<4x8xf32>
    %cst_65 = arith.constant 2.000000e+00 : f32
    %146 = vector.broadcast %cst_65 : f32 to vector<4x8xf32>
    %147 = arith.mulf %146, %141 : vector<4x8xf32>
    %148 = arith.mulf %147, %141 : vector<4x8xf32>
    %149 = arith.subf %145, %148 : vector<4x8xf32>
    %150 = vector.shape_cast %149 : vector<4x8xf32> to vector<1x4x8xf32>
    %cst_66 = arith.constant dense<0.000000e+00> : vector<1xf32>
    %151 = vector.multi_reduction <add>, %150, %cst_66 [1, 2] : vector<1x4x8xf32> to vector<1xf32>
    %152 = vector.shape_cast %151 : vector<1xf32> to vector<1x1x1xf32>
    %153 = vector.extract %152[0, 0, 0] : f32 from vector<1x1x1xf32>
    %cst_67 = arith.constant 1.562500e-02 : f32
    %154 = arith.mulf %153, %cst_67 : f32
    %cst_68 = arith.constant 1.000000e-03 : f32
    %155 = arith.mulf %154, %cst_68 : f32
    %156 = arith.addf %139, %155 : f32
    %157 = tpu.iota {dimensions = array<i32: 1>} : vector<8x128xi32>
    %c38_i32 = arith.constant 38 : i32
    %158 = vector.broadcast %c38_i32 : i32 to vector<8x128xi32>
    %159 = arith.cmpi eq, %157, %158 : vector<8x128xi32>
    %160 = vector.broadcast %156 : f32 to vector<8x128xf32>
    %161 = arith.select %159, %160, %109 : vector<8x128xi1>, vector<8x128xf32>
    %c0_69 = arith.constant 0 : index
    %c0_70 = arith.constant 0 : index
    %c0_71 = arith.constant 0 : index
    %162 = vector.load %arg7[%c0_69, %c0_70, %c0_71] : memref<1x8x128xf32, #tpu.memory_space<vmem>>, vector<1x8x128xf32>
    %163 = vector.shape_cast %162 : vector<1x8x128xf32> to vector<8x128xf32>
    %164 = vector.shape_cast %161 : vector<8x128xf32> to vector<1x8x128xf32>
    tpu.vector_store %arg7[%c0_69, %c0_70, %c0_71], %164 {strides = array<i32>} : memref<1x8x128xf32, #tpu.memory_space<vmem>>, vector<1x8x128xf32>,
    return
  }
  func.func @transform_0(%arg0: i32) -> (i32, i32, i32) {
    %c0_i32 = arith.constant 0 : i32
    %c0_i32_0 = arith.constant 0 : i32
    %c0_i32_1 = arith.constant 0 : i32
    return %arg0, %c0_i32, %c0_i32_0 : i32, i32, i32
  }
  func.func @transform_1(%arg0: i32) -> (i32, i32, i32) {
    %c0_i32 = arith.constant 0 : i32
    %c0_i32_0 = arith.constant 0 : i32
    %c0_i32_1 = arith.constant 0 : i32
    return %arg0, %c0_i32, %c0_i32_0 : i32, i32, i32
  }
  func.func @transform_2(%arg0: i32) -> (i32, i32, i32) {
    %c0_i32 = arith.constant 0 : i32
    %c0_i32_0 = arith.constant 0 : i32
    %c0_i32_1 = arith.constant 0 : i32
    return %arg0, %c0_i32, %c0_i32_0 : i32, i32, i32
  }
  func.func @transform_3(%arg0: i32) -> (i32, i32) {
    %c0_i32 = arith.constant 0 : i32
    %c0_i32_0 = arith.constant 0 : i32
    %c0_i32_1 = arith.constant 0 : i32
    return %c0_i32, %c0_i32_0 : i32, i32
  }
  func.func @transform_4(%arg0: i32) -> (i32, i32) {
    %c0_i32 = arith.constant 0 : i32
    %c0_i32_0 = arith.constant 0 : i32
    %c0_i32_1 = arith.constant 0 : i32
    return %c0_i32, %c0_i32_0 : i32, i32
  }
  func.func @transform_5(%arg0: i32) -> (i32, i32) {
    %c0_i32 = arith.constant 0 : i32
    %c0_i32_0 = arith.constant 0 : i32
    %c0_i32_1 = arith.constant 0 : i32
    return %c0_i32, %c0_i32_0 : i32, i32
  }
  func.func @transform_6(%arg0: i32) -> (i32, i32, i32) {
    %c0_i32 = arith.constant 0 : i32
    %c0_i32_0 = arith.constant 0 : i32
    %c0_i32_1 = arith.constant 0 : i32
    return %arg0, %c0_i32, %c0_i32_0 : i32, i32, i32
  }
}

</mosaic_0001>

<llo_original>
// kernel: rnn_agent_rollout.1
$region0: #{rnn_agent_rollout.1}
  #allocation0 [shape = 'u32[]', space=smem, size = 0x4, offset = 0x4, fixed_abs, tag = 'smem constant byte address 0x4 - core index']
  #allocation1 [shape = 'u32[72,128]{1,0:T(1,128)}', space=vmem, size = 0x9000, scoped, tag = 'internal scratch']
  #allocation2 [shape = 'f32[8,32]{1,0:T(8,128)}', space=vmem, size = 0x1000, scoped, tag = 'scratch operand']
  %s0 = inlined_call_operand.hbm [shape: f32[8,8,24], index: 0, kind: input, shape index: {}]
  %s1 = inlined_call_operand.hbm [shape: f32[8,4,16], index: 1, kind: input, shape index: {}]
  %s2 = inlined_call_operand.hbm [shape: f32[8,8,8], index: 2, kind: input, shape index: {}]
  %s3 = inlined_call_operand.hbm [shape: f32[8,32], index: 3, kind: input, shape index: {}]
  %s4 = inlined_call_operand.hbm [shape: f32[224,128], index: 4, kind: input, shape index: {}]
  %s5 = inlined_call_operand.hbm [shape: f32[8,128], index: 5, kind: input, shape index: {}]
  %s6 = inlined_call_operand.vmem [shape: f32[8,8,128], index: 6, kind: output, shape index: {}]
  %s7 = sld [smem:[#allocation0]]
  $region85: #{rnn_agent_rollout.1} parent=0
    _
  %s9 = ssub.s32 1, %s7
  %s10 = scalar_select 0, %s9, %s7
  $region1: #{rnn_agent_rollout.1} parent=0
    #allocation3 [shape = 'u8[8192]{0}', space=vmem, size = 0x2000, scoped, tag = 'input window, operand 0']
    #allocation4 [shape = 's32[2]{0}', space=sflag, size = 0x8, scoped, tag = 'scoped memory for rnn_agent_rollout.1']
    #allocation5 [shape = 'u8[4096]{0}', space=vmem, size = 0x1000, scoped, tag = 'input window, operand 1']
    #allocation6 [shape = 's32[2]{0}', space=sflag, size = 0x8, scoped, tag = 'scoped memory for rnn_agent_rollout.1']
    #allocation7 [shape = 'u8[8192]{0}', space=vmem, size = 0x2000, scoped, tag = 'input window, operand 2']
    #allocation8 [shape = 'u8[4096]{0}', space=vmem, size = 0x1000, scoped, tag = 'input window, operand 3, single buffered']
    #allocation9 [shape = 's32[1]{0}', space=sflag, size = 0x4, scoped, tag = 'scoped memory for rnn_agent_rollout.1']
    #allocation10 [shape = 'u8[114688]{0}', space=vmem, size = 0x1c000, scoped, tag = 'input window, operand 4, single buffered']
    #allocation11 [shape = 'u8[4096]{0}', space=vmem, size = 0x1000, scoped, tag = 'input window, operand 5, single buffered']
    #allocation12 [shape = 's32[1]{0}', space=sflag, size = 0x4, scoped, tag = 'scoped memory for rnn_agent_rollout.1']
    %11 = vsyncpa [#allocation4], 0
    %s12 = scalar_lea.sflag [#allocation4], 1
    %13 = vsyncpa %s12, 0
    %14 = vsyncpa [#allocation6], 0
    %s15 = scalar_lea.sflag [#allocation6], 1
    %16 = vsyncpa %s15, 0
    %17 = vsyncpa [#allocation9], 0
    %18 = vsyncpa [#allocation12], 0
    loop: start=0, step=1, limit=10
    $region2: #{rnn_agent_rollout.1} parent=1 // loop_pre_header
      _
    $region3: #{rnn_agent_rollout.1} parent=1 // loop_header
      %s20 = sphi 0, %s24
      %p21 = scmp.ge.s32.totalorder %s20, 10
      %s30 = sphi 0, %s32
      %s33 = sphi 0, %s30
      %s34 = sphi 0, %s33
      %s50 = sphi 0, %s34
      %s56 = sphi 0, %s58
      %s59 = sphi 0, %s56
      %s60 = sphi 0, %s59
      %s76 = sphi 0, %s60
      %s82 = sphi 0, %s84
      %s85 = sphi 0, %s82
      %s86 = sphi 0, %s85
      %s102 = sphi 0, %s86
      %s106 = sphi 0, %s106
      %s108 = sphi 0, %s106
      %s109 = sphi 0, %s108
      %s123 = sphi 0, %s109
      %s127 = sphi 0, %s127
      %s129 = sphi 0, %s127
      %s130 = sphi 0, %s129
      %s144 = sphi 0, %s130
      %s148 = sphi 0, %s148
      %s150 = sphi 0, %s148
      %s151 = sphi 0, %s150
      %s165 = sphi 0, %s151
      %s171 = sphi 0, %s173
      %s174 = sphi 0, %s171
      %s175 = sphi 0, %s174
      %s191 = sphi 0, %s175
    $region4: #{rnn_agent_rollout.1} parent=1 // loop_header_branch
      %23 = sbr.rel (%p21) target = $region8
    $region5: #{rnn_agent_rollout.1} parent=1 // loop_body
      %s25 = ssub.s32 %s20, 1
      %s26 = ssub.s32 %s20, 2
      %s27 = sadd.s32 %s20, 1
      %s28 = ssub.s32 %s20, %s27
      %p29 = scmp.eq.s32.totalorder %s28, 0
      %s31 = sadd.s32 %s30, 1
      %s32 = scalar_select %p29, %s30, %s31
      %p35 = pneg %p29
      %p36 = scmp.eq.s32.totalorder %s20, 7
      %p37 = por %p35, %p36
      %p38 = scmp.ne.s32.totalorder %s30, %s33
      %p39 = scmp.eq.s32.totalorder %s20, 0
      %p40 = por %p38, %p39
      %p41 = scmp.ne.s32.totalorder %s30, %s33
      %p42 = scmp.eq.s32.totalorder %s25, 7
      %p43 = por %p41, %p42
      %p44 = scmp.ne.s32.totalorder %s33, %s34
      %p45 = scmp.eq.s32.totalorder %s25, 0
      %p46 = por %p44, %p45
      %p47 = scmp.ne.s32.totalorder %s33, %s34
      %p48 = scmp.eq.s32.totalorder %s26, 7
      %p49 = por %p47, %p48
      %p51 = scmp.ne.s32.totalorder %s34, %s50
      %p52 = scmp.eq.s32.totalorder %s26, 0
      %p53 = por %p51, %p52
      %s54 = ssub.s32 %s20, %s27
      %p55 = scmp.eq.s32.totalorder %s54, 0
      %s57 = sadd.s32 %s56, 1
      %s58 = scalar_select %p55, %s56, %s57
      %p61 = pneg %p55
      %p62 = scmp.eq.s32.totalorder %s20, 7
      %p63 = por %p61, %p62
      %p64 = scmp.ne.s32.totalorder %s56, %s59
      %p65 = scmp.eq.s32.totalorder %s20, 0
      %p66 = por %p64, %p65
      %p67 = scmp.ne.s32.totalorder %s56, %s59
      %p68 = scmp.eq.s32.totalorder %s25, 7
      %p69 = por %p67, %p68
      %p70 = scmp.ne.s32.totalorder %s59, %s60
      %p71 = scmp.eq.s32.totalorder %s25, 0
      %p72 = por %p70, %p71
      %p73 = scmp.ne.s32.totalorder %s59, %s60
      %p74 = scmp.eq.s32.totalorder %s26, 7
      %p75 = por %p73, %p74
      %p77 = scmp.ne.s32.totalorder %s60, %s76
      %p78 = scmp.eq.s32.totalorder %s26, 0
      %p79 = por %p77, %p78
      %s80 = ssub.s32 %s20, %s27
      %p81 = scmp.eq.s32.totalorder %s80, 0
      %s83 = sadd.s32 %s82, 1
      %s84 = scalar_select %p81, %s82, %s83
      %p87 = pneg %p81
      %p88 = scmp.eq.s32.totalorder %s20, 7
      %p89 = por %p87, %p88
      %p90 = scmp.ne.s32.totalorder %s82, %s85
      %p91 = scmp.eq.s32.totalorder %s20, 0
      %p92 = por %p90, %p91
      %p93 = scmp.ne.s32.totalorder %s82, %s85
      %p94 = scmp.eq.s32.totalorder %s25, 7
      %p95 = por %p93, %p94
      %p96 = scmp.ne.s32.totalorder %s85, %s86
      %p97 = scmp.eq.s32.totalorder %s25, 0
      %p98 = por %p96, %p97
      %p99 = scmp.ne.s32.totalorder %s85, %s86
      %p100 = scmp.eq.s32.totalorder %s26, 7
      %p101 = por %p99, %p100
      %p103 = scmp.ne.s32.totalorder %s86, %s102
      %p104 = scmp.eq.s32.totalorder %s26, 0
      %p105 = por %p103, %p104
      %s107 = sadd.s32 %s106, 1
      %p110 = scmp.eq.s32.totalorder %s20, 7
      %p111 = scmp.ne.s32.totalorder %s106, %s108
      %p112 = scmp.eq.s32.totalorder %s20, 0
      %p113 = por %p111, %p112
      %p114 = scmp.ne.s32.totalorder %s106, %s108
      %p115 = scmp.eq.s32.totalorder %s25, 7
      %p116 = por %p114, %p115
      %p117 = scmp.ne.s32.totalorder %s108, %s109
      %p118 = scmp.eq.s32.totalorder %s25, 0
      %p119 = por %p117, %p118
      %p120 = scmp.ne.s32.totalorder %s108, %s109
      %p121 = scmp.eq.s32.totalorder %s26, 7
      %p122 = por %p120, %p121
      %p124 = scmp.ne.s32.totalorder %s109, %s123
      %p125 = scmp.eq.s32.totalorder %s26, 0
      %p126 = por %p124, %p125
      %s128 = sadd.s32 %s127, 1
      %p131 = scmp.eq.s32.totalorder %s20, 7
      %p132 = scmp.ne.s32.totalorder %s127, %s129
      %p133 = scmp.eq.s32.totalorder %s20, 0
      %p134 = por %p132, %p133
      %p135 = scmp.ne.s32.totalorder %s127, %s129
      %p136 = scmp.eq.s32.totalorder %s25, 7
      %p137 = por %p135, %p136
      %p138 = scmp.ne.s32.totalorder %s129, %s130
      %p139 = scmp.eq.s32.totalorder %s25, 0
      %p140 = por %p138, %p139
      %p141 = scmp.ne.s32.totalorder %s129, %s130
      %p142 = scmp.eq.s32.totalorder %s26, 7
      %p143 = por %p141, %p142
      %p145 = scmp.ne.s32.totalorder %s130, %s144
      %p146 = scmp.eq.s32.totalorder %s26, 0
      %p147 = por %p145, %p146
      %s149 = sadd.s32 %s148, 1
      %p152 = scmp.eq.s32.totalorder %s20, 7
      %p153 = scmp.ne.s32.totalorder %s148, %s150
      %p154 = scmp.eq.s32.totalorder %s20, 0
      %p155 = por %p153, %p154
      %p156 = scmp.ne.s32.totalorder %s148, %s150
      %p157 = scmp.eq.s32.totalorder %s25, 7
      %p158 = por %p156, %p157
      %p159 = scmp.ne.s32.totalorder %s150, %s151
      %p160 = scmp.eq.s32.totalorder %s25, 0
      %p161 = por %p159, %p160
      %p162 = scmp.ne.s32.totalorder %s150, %s151
      %p163 = scmp.eq.s32.totalorder %s26, 7
      %p164 = por %p162, %p163
      %p166 = scmp.ne.s32.totalorder %s151, %s165
      %p167 = scmp.eq.s32.totalorder %s26, 0
      %p168 = por %p166, %p167
      %s169 = ssub.s32 %s20, %s27
      %p170 = scmp.eq.s32.totalorder %s169, 0
      %s172 = sadd.s32 %s171, 1
      %s173 = scalar_select %p170, %s171, %s172
      %p176 = pneg %p170
      %p177 = scmp.eq.s32.totalorder %s20, 7
      %p178 = por %p176, %p177
      %p179 = scmp.ne.s32.totalorder %s171, %s174
      %p180 = scmp.eq.s32.totalorder %s20, 0
      %p181 = por %p179, %p180
      %p182 = scmp.ne.s32.totalorder %s171, %s174
      %p183 = scmp.eq.s32.totalorder %s25, 7
      %p184 = por %p182, %p183
      %p185 = scmp.ne.s32.totalorder %s174, %s175
      %p186 = scmp.eq.s32.totalorder %s25, 0
      %p187 = por %p185, %p186
      %p188 = scmp.ne.s32.totalorder %s174, %s175
      %p189 = scmp.eq.s32.totalorder %s26, 7
      %p190 = por %p188, %p189
      %p192 = scmp.ne.s32.totalorder %s175, %s191
      %p193 = scmp.eq.s32.totalorder %s26, 0
      %p194 = por %p192, %p193
      %p195 = scmp.le.s32.totalorder 1, %s20
      %p196 = scmp.lt.s32.totalorder %s20, 9
      %p197 = pnand %p195, %p196
      %p198 = pneg %p197
      // Predicated region
      $region9: #{rnn_agent_rollout.1} parent=5 // pred_check
        _
      $region10: #{rnn_agent_rollout.1} parent=5 // pred_check_branch
        %200 = sbr.rel (%p197) target = $region12
      $region11: #{rnn_agent_rollout.1} parent=5 // pred_region
        %s201 = ssub.s32 %s20, 1
        // Predicated region
        $region13: #{rnn_agent_rollout.1} parent=11 // pred_check
          %p202 = pneg %p119
        $region14: #{rnn_agent_rollout.1} parent=11 // pred_check_branch
          %204 = sbr.rel (%p202) target = $region16
        $region15: #{rnn_agent_rollout.1} parent=11 // pred_region
          %206 = vsyncadd [#allocation9], 0
          %s208 = sshll.u32 %s3, 4
          %s209 = int_to_ptr.hbm [resolvable:$true] %s208
          %s210 = sshll.u32 [#allocation8], 4
          %s211 = int_to_ptr.vmem [resolvable:$true] %s210
          %213 = dma.hbm_to_vmem [thread:$0]  %s209, 128, %s211, [#allocation9]
        $region16: #{rnn_agent_rollout.1} parent=11 // pred_fallthru
          _
        // Predicated region
        $region17: #{rnn_agent_rollout.1} parent=11 // pred_check
          %p214 = pneg %p140
        $region18: #{rnn_agent_rollout.1} parent=11 // pred_check_branch
          %216 = sbr.rel (%p214) target = $region20
        $region19: #{rnn_agent_rollout.1} parent=11 // pred_region
          %218 = vsyncadd [#allocation9], 0
          %s219 = sshll.u32 %s4, 4
          %s220 = int_to_ptr.hbm [resolvable:$true] %s219
          %s221 = sshll.u32 [#allocation10], 4
          %s222 = int_to_ptr.vmem [resolvable:$true] %s221
          %227 = dma.hbm_to_vmem [thread:$0]  %s220, 3584, %s222, [#allocation9], 128, 128, 8
        $region20: #{rnn_agent_rollout.1} parent=11 // pred_fallthru
          _
        // Predicated region
        $region21: #{rnn_agent_rollout.1} parent=11 // pred_check
          %p228 = pneg %p161
        $region22: #{rnn_agent_rollout.1} parent=11 // pred_check_branch
          %230 = sbr.rel (%p228) target = $region24
        $region23: #{rnn_agent_rollout.1} parent=11 // pred_region
          %232 = vsyncadd [#allocation12], 0
          %s234 = sshll.u32 %s5, 4
          %s235 = int_to_ptr.hbm [resolvable:$true] %s234
          %s236 = sshll.u32 [#allocation11], 4
          %s237 = int_to_ptr.vmem [resolvable:$true] %s236
          %239 = dma.hbm_to_vmem [thread:$0]  %s235, 128, %s237, [#allocation12]
        $region24: #{rnn_agent_rollout.1} parent=11 // pred_fallthru
          _
      $region12: #{rnn_agent_rollout.1} parent=5 // pred_fallthru
        _
      %p240 = scmp.lt.s32.totalorder %s20, 8
      // Predicated region
      $region25: #{rnn_agent_rollout.1} parent=5 // pred_check
        %p241 = pneg %p240
      $region26: #{rnn_agent_rollout.1} parent=5 // pred_check_branch
        %243 = sbr.rel (%p241) target = $region28
      $region27: #{rnn_agent_rollout.1} parent=5 // pred_region
        // Predicated region
        $region29: #{rnn_agent_rollout.1} parent=27 // pred_check
          %p244 = pneg %p40
        $region30: #{rnn_agent_rollout.1} parent=27 // pred_check_branch
          %246 = sbr.rel (%p244) target = $region32
        $region31: #{rnn_agent_rollout.1} parent=27 // pred_region
          %s247 = sand.u32 %s30, 1
          %s248 = scalar_lea.sflag [#allocation4], %s247
          %s249 = sand.u32 %s30, 1
          %s250 = smul.addr %s249, 8
          %s251 = scalar_lea.vmem [#allocation3], %s250
          %253 = vsyncadd %s248, 0
          %s254 = smul.addr %s20, 8
          %s255 = scalar_lea.hbm %s0, %s254
          %s257 = sshll.u32 %s255, 4
          %s258 = int_to_ptr.hbm [resolvable:$true] %s257
          %s259 = sshll.u32 %s251, 4
          %s260 = int_to_ptr.vmem [resolvable:$true] %s259
          %262 = dma.hbm_to_vmem [thread:$0]  %s258, 128, %s260, %s248
        $region32: #{rnn_agent_rollout.1} parent=27 // pred_fallthru
          _
        // Predicated region
        $region33: #{rnn_agent_rollout.1} parent=27 // pred_check
          %p263 = pneg %p66
        $region34: #{rnn_agent_rollout.1} parent=27 // pred_check_branch
          %265 = sbr.rel (%p263) target = $region36
        $region35: #{rnn_agent_rollout.1} parent=27 // pred_region
          %s266 = sand.u32 %s20, 1
          %s267 = scalar_lea.sflag [#allocation6], %s266
          %s268 = sand.u32 %s56, 1
          %s269 = smul.addr %s268, 4
          %s270 = scalar_lea.vmem [#allocation5], %s269
          %272 = vsyncadd %s267, 0
          %s273 = smul.addr %s20, 4
          %s274 = scalar_lea.hbm %s1, %s273
          %s276 = sshll.u32 %s274, 4
          %s277 = int_to_ptr.hbm [resolvable:$true] %s276
          %s278 = sshll.u32 %s270, 4
          %s279 = int_to_ptr.vmem [resolvable:$true] %s278
          %281 = dma.hbm_to_vmem [thread:$0]  %s277, 64, %s279, %s267
        $region36: #{rnn_agent_rollout.1} parent=27 // pred_fallthru
          _
        // Predicated region
        $region37: #{rnn_agent_rollout.1} parent=27 // pred_check
          %p282 = pneg %p92
        $region38: #{rnn_agent_rollout.1} parent=27 // pred_check_branch
          %284 = sbr.rel (%p282) target = $region40
        $region39: #{rnn_agent_rollout.1} parent=27 // pred_region
          %s285 = sand.u32 %s20, 1
          %s286 = scalar_lea.sflag [#allocation6], %s285
          %s287 = sand.u32 %s82, 1
          %s288 = smul.addr %s287, 8
          %s289 = scalar_lea.vmem [#allocation7], %s288
          %291 = vsyncadd %s286, 0
          %s292 = smul.addr %s20, 8
          %s293 = scalar_lea.hbm %s2, %s292
          %s295 = sshll.u32 %s293, 4
          %s296 = int_to_ptr.hbm [resolvable:$true] %s295
          %s297 = sshll.u32 %s289, 4
          %s298 = int_to_ptr.vmem [resolvable:$true] %s297
          %300 = dma.hbm_to_vmem [thread:$0]  %s296, 128, %s298, %s286
        $region40: #{rnn_agent_rollout.1} parent=27 // pred_fallthru
          _
      $region28: #{rnn_agent_rollout.1} parent=5 // pred_fallthru
        _
      %p301 = scmp.le.s32.totalorder 1, %s20
      %p302 = scmp.lt.s32.totalorder %s20, 9
      %p303 = pnand %p301, %p302
      %p304 = pneg %p303
      // Predicated region
      $region41: #{rnn_agent_rollout.1} parent=5 // pred_check
        _
      $region42: #{rnn_agent_rollout.1} parent=5 // pred_check_branch
        %306 = sbr.rel (%p303) target = $region44
      $region43: #{rnn_agent_rollout.1} parent=5 // pred_region
        %s307 = ssub.s32 %s20, 1
        %s308 = sand.u32 %s33, 1
        %s309 = scalar_lea.sflag [#allocation4], %s308
        %s310 = sand.u32 %s33, 1
        %s311 = smul.addr %s310, 8
        %s312 = scalar_lea.vmem [#allocation3], %s311
        // Predicated region
        $region45: #{rnn_agent_rollout.1} parent=43 // pred_check
          %p313 = pneg %p46
        $region46: #{rnn_agent_rollout.1} parent=43 // pred_check_branch
          %315 = sbr.rel (%p313) target = $region48
        $region47: #{rnn_agent_rollout.1} parent=43 // pred_region
          %317 = dma.done %s309, 128
        $region48: #{rnn_agent_rollout.1} parent=43 // pred_fallthru
          _
        %s318 = sand.u32 %s25, 1
        %s319 = scalar_lea.sflag [#allocation6], %s318
        %s320 = sand.u32 %s59, 1
        %s321 = smul.addr %s320, 4
        %s322 = scalar_lea.vmem [#allocation5], %s321
        // Predicated region
        $region49: #{rnn_agent_rollout.1} parent=43 // pred_check
          %p323 = pneg %p72
        $region50: #{rnn_agent_rollout.1} parent=43 // pred_check_branch
          %325 = sbr.rel (%p323) target = $region52
        $region51: #{rnn_agent_rollout.1} parent=43 // pred_region
          %327 = dma.done %s319, 64
        $region52: #{rnn_agent_rollout.1} parent=43 // pred_fallthru
          _
        %s328 = sand.u32 %s25, 1
        %s329 = scalar_lea.sflag [#allocation6], %s328
        %s330 = sand.u32 %s85, 1
        %s331 = smul.addr %s330, 8
        %s332 = scalar_lea.vmem [#allocation7], %s331
        // Predicated region
        $region53: #{rnn_agent_rollout.1} parent=43 // pred_check
          %p333 = pneg %p98
        $region54: #{rnn_agent_rollout.1} parent=43 // pred_check_branch
          %335 = sbr.rel (%p333) target = $region56
        $region55: #{rnn_agent_rollout.1} parent=43 // pred_region
          %337 = dma.done %s329, 128
        $region56: #{rnn_agent_rollout.1} parent=43 // pred_fallthru
          _
        // Predicated region
        $region57: #{rnn_agent_rollout.1} parent=43 // pred_check
          %p338 = pneg %p119
        $region58: #{rnn_agent_rollout.1} parent=43 // pred_check_branch
          %340 = sbr.rel (%p338) target = $region60
        $region59: #{rnn_agent_rollout.1} parent=43 // pred_region
          %342 = dma.done [#allocation9], 128
        $region60: #{rnn_agent_rollout.1} parent=43 // pred_fallthru
          _
        // Predicated region
        $region61: #{rnn_agent_rollout.1} parent=43 // pred_check
          %p343 = pneg %p140
        $region62: #{rnn_agent_rollout.1} parent=43 // pred_check_branch
          %345 = sbr.rel (%p343) target = $region64
        $region63: #{rnn_agent_rollout.1} parent=43 // pred_region
          %347 = dma.done [#allocation9], 3584
        $region64: #{rnn_agent_rollout.1} parent=43 // pred_fallthru
          _
        // Predicated region
        $region65: #{rnn_agent_rollout.1} parent=43 // pred_check
          %p348 = pneg %p161
        $region66: #{rnn_agent_rollout.1} parent=43 // pred_check_branch
          %350 = sbr.rel (%p348) target = $region68
        $region67: #{rnn_agent_rollout.1} parent=43 // pred_region
          %352 = dma.done [#allocation12], 128
        $region68: #{rnn_agent_rollout.1} parent=43 // pred_fallthru
          _
        %s353 = sand.u32 %s33, 1
        %s354 = scalar_lea.sflag [#allocation4], %s353
        %s355 = sand.u32 %s33, 1
        %s356 = smul.addr %s355, 8
        %s357 = scalar_lea.vmem [#allocation3], %s356
        %p358 = pneg %p46
        %p359 = pneg %p43
        %s360 = sand.u32 %s25, 1
        %s361 = scalar_lea.sflag [#allocation6], %s360
        %s362 = sand.u32 %s59, 1
        %s363 = smul.addr %s362, 4
        %s364 = scalar_lea.vmem [#allocation5], %s363
        %p365 = pneg %p72
        %p366 = pneg %p69
        %s367 = sand.u32 %s25, 1
        %s368 = scalar_lea.sflag [#allocation6], %s367
        %s369 = sand.u32 %s85, 1
        %s370 = smul.addr %s369, 8
        %s371 = scalar_lea.vmem [#allocation7], %s370
        %p372 = pneg %p98
        %p373 = pneg %p95
        %p374 = pneg %p119
        %p375 = pneg %p116
        %p376 = pneg %p140
        %p377 = pneg %p137
        %p378 = pneg %p161
        %p379 = pneg %p158
        %p380 = pneg %p187
        %p381 = pneg %p184
        %p382 = scmp.lt.s32.totalorder %s25, 7
        %s383 = scalar_select %p382, %s25, 7
        %s384 = smul.addr %s383, 8
        %s385 = scalar_lea.vmem %s6, %s384
        %p386 = scmp.lt.s32.totalorder %s25, 7
        %s387 = scalar_select %p386, %s25, 7
        %s388 = smul.addr %s387, 8
        %s389 = scalar_lea.vmem %s6, %s388
        %p390 = scmp.eq.s32.totalorder %s25, 0
        // Predicated region
        $region69: #{rnn_agent_rollout.1} parent=43 // pred_check
          %p391 = pneg %p390
        $region70: #{rnn_agent_rollout.1} parent=43 // pred_check_branch
          %393 = sbr.rel (%p391) target = $region72
        $region71: #{rnn_agent_rollout.1} parent=43 // pred_region
          %v394 = vld [vmem:[#allocation8] sm:$0xff]
          %vm395 = vcmask 261120
          %396 = vst.msk [vmem:[#allocation2] sm:$0xff] %vm395, %v394
        $region72: #{rnn_agent_rollout.1} parent=43 // pred_fallthru
          _
        %v397 = vld [vmem:[%s312] sm:$0xff]
        %v398 = vld [vmem:[%s322] sm:$0xf]
        %v399 = vld [vmem:[%s332] sm:$0xff]
        %v400 = vld [vmem:[#allocation2] sm:$0xff]
        %v401 = vld [vmem:[#allocation10 + $0x48] sm:$0xff]
        %vm402 = vcmask 31744
        %v404 = vsel %vm402, %v401, 0
        %vm406 = vcmask 1043456
        %v408 = vsel %vm406, %v398, 0
        %410 = vmatpush.msra.mxu0 0.0
        %411 = vmatpush.msra.mxu0 0.0
        %412 = vmatpush.msra.mxu0 0.0
        %413 = vmatpush.msra.mxu0 0.0
        %414 = vmatpush.msra.mxu0 0.0
        %415 = vmatpush.msra.mxu0 0.0
        %416 = vmatpush.msra.mxu0 0.0
        %417 = vmatpush.msra.mxu0 0.0
        %418 = vmatpush.msra.mxu0 0.0
        %419 = vmatpush.msra.mxu0 0.0
        %420 = vmatpush.msra.mxu0 0.0
        %421 = vmatpush.msra.mxu0 0.0
        %422 = vmatpush.msra.mxu0 0.0
        %423 = vmatpush.msra.mxu0 0.0
        %424 = vmatpush.msra.mxu0 0.0
        %425 = vmatpush.msra.mxu0 %v408
        %426 = vmatmul.f32.gmra.mxu0 %v404
        %v427 = vpop.f32.mrf.mxu0
        %v428 = vadd.f32 0.0, %v427
        %429 = vdwg.mxu0
        %v430 = vld [vmem:[#allocation10] sm:$0xff]
        %v431 = vld [vmem:[#allocation10 + $0x8] sm:$0xff]
        %v432 = vld [vmem:[#allocation10 + $0x10] sm:$0xff]
        %v433 = vld [vmem:[#allocation11] sm:$0x1]
        %v434 = vperm.slane %v433, 0
        %vm435 = vcmask 195584
        %v437 = vsel %vm435, %v397, 0
        %439 = vmatpush.msra.mxu0 0.0
        %440 = vmatpush.msra.mxu0 0.0
        %441 = vmatpush.msra.mxu0 0.0
        %442 = vmatpush.msra.mxu0 0.0
        %443 = vmatpush.msra.mxu0 0.0
        %444 = vmatpush.msra.mxu0 0.0
        %445 = vmatpush.msra.mxu0 0.0
        %446 = vmatpush.msra.mxu0 0.0
        %447 = vmatpush.msra.mxu0 0.0
        %448 = vmatpush.msra.mxu0 0.0
        %449 = vmatpush.msra.mxu0 0.0
        %450 = vmatpush.msra.mxu0 0.0
        %451 = vmatpush.msra.mxu0 0.0
        %452 = vmatpush.msra.mxu0 %v432
        %453 = vmatpush.msra.mxu0 %v431
        %454 = vmatpush.msra.mxu0 %v430
        %455 = vmatmul.f32.gmra.mxu0 %v437
        %v456 = vpop.f32.mrf.mxu0
        %v457 = vadd.f32 %v434, %v456
        %458 = vdwg.mxu0
        %v459 = vld [vmem:[#allocation10 + $0x18] sm:$0xff]
        %v460 = vld [vmem:[#allocation10 + $0x20] sm:$0xff]
        %v461 = vld [vmem:[#allocation10 + $0x28] sm:$0xff]
        %v462 = vld [vmem:[#allocation10 + $0x30] sm:$0xff]
        %v463 = vld [vmem:[#allocation10 + $0x38] sm:$0xff]
        %v464 = vld [vmem:[#allocation10 + $0x40] sm:$0xff]
        %vm465 = vcmask 130048
        %v467 = vsel %vm465, %v428, 0
        %469 = vmatpush.msra.mxu0 0.0
        %470 = vmatpush.msra.mxu0 0.0
        %471 = vmatpush.msra.mxu0 0.0
        %472 = vmatpush.msra.mxu0 0.0
        %473 = vmatpush.msra.mxu0 0.0
        %474 = vmatpush.msra.mxu0 0.0
        %475 = vmatpush.msra.mxu0 0.0
        %476 = vmatpush.msra.mxu0 0.0
        %477 = vmatpush.msra.mxu0 0.0
        %478 = vmatpush.msra.mxu0 0.0
        %479 = vmatpush.msra.mxu0 0.0
        %480 = vmatpush.msra.mxu0 0.0
        %481 = vmatpush.msra.mxu0 0.0
        %482 = vmatpush.msra.mxu0 0.0
        %483 = vmatpush.msra.mxu0 %v464
        %484 = vmatpush.msra.mxu0 %v463
        %485 = vmatmul.f32.gmra.mxu0 %v467
        %v486 = vpop.f32.mrf.mxu0
        %v487 = vadd.f32 0.0, %v486
        %488 = vdwg.mxu0
        %vm489 = vcmask 261120
        %v491 = vsel %vm489, %v400, 0
        %493 = vmatpush.msra.mxu0 0.0
        %494 = vmatpush.msra.mxu0 0.0
        %495 = vmatpush.msra.mxu0 0.0
        %496 = vmatpush.msra.mxu0 0.0
        %497 = vmatpush.msra.mxu0 0.0
        %498 = vmatpush.msra.mxu0 0.0
        %499 = vmatpush.msra.mxu0 0.0
        %500 = vmatpush.msra.mxu0 0.0
        %501 = vmatpush.msra.mxu0 0.0
        %502 = vmatpush.msra.mxu0 0.0
        %503 = vmatpush.msra.mxu0 0.0
        %504 = vmatpush.msra.mxu0 0.0
        %505 = vmatpush.msra.mxu0 %v462
        %506 = vmatpush.msra.mxu0 %v461
        %507 = vmatpush.msra.mxu0 %v460
        %508 = vmatpush.msra.mxu0 %v459
        %509 = vmatmul.f32.gmra.mxu0 %v491
        %v510 = vpop.f32.mrf.mxu0
        %v511 = vadd.f32 %v487, %v510
        %512 = vdwg.mxu0
        %v513 = vld [vmem:[#allocation11 + $0x1] sm:$0x1]
        %v514 = vperm.slane %v513, 0
        %v515 = vadd.f32 %v511, %v514
        %517 = vrot.lane.b32.xlu0 %v515, 64
        %v518 = vpop.permute.xlu0 %517
        %v520 = vsel %vm489, %v457, %v518
        %vm521 = vcmask 523264
        %v522 = vsel %vm521, %v520, 0.0
        %v523 = vrot.slane %v522, 4
        %v524 = vadd.f32 %v522, %v523
        %v525 = vrot.slane %v524, 2
        %v526 = vadd.f32 %v524, %v525
        %v527 = vrot.slane %v526, 1
        %v528 = vadd.f32 %v526, %v527
        %v529 = vrcp.pop 8.0
        %v530 = vmul.f32 8.0, %v529
        %v531 = vsub.f32 1.0, %v530
        %v532 = vmul.f32 %v529, %v531
        %v533 = vadd.f32 %v529, %v532
        %vm534 = vweird.f32 %v529
        %v535 = vsel %vm534, %v529, %v533
        %v536 = vmul.f32 %v528, %v535
        %v537 = vsub.f32 %v520, %v536
        %v538 = vmul.f32 %v537, %v537
        %v539 = vsel %vm521, %v538, 0.0
        %v540 = vrot.slane %v539, 4
        %v541 = vadd.f32 %v539, %v540
        %v542 = vrot.slane %v541, 2
        %v543 = vadd.f32 %v541, %v542
        %v544 = vrot.slane %v543, 1
        %v545 = vadd.f32 %v543, %v544
        %v546 = vmul.f32 %v545, %v535
        %v547 = vadd.f32 %v546, 1e-05
        %v548 = vrsqrt.pop %v547
        %v549 = vmul.f32 %v548, %v547
        %v550 = vmul.f32 %v549, %v548
        %v551 = vmul.f32 0.5, %v550
        %v552 = vsub.f32 1.5, %v551
        %v553 = vmul.f32 %v548, %v552
        %vm554 = vweird.f32 %v547
        %vm555 = vweird.f32 %v548
        %vm556 = vmor %vm554, %vm555
        %v557 = vsel %vm556, %v548, %v553
        %v558 = vmul.f32 %v537, %v557
        %v559 = vld [vmem:[#allocation11 + $0x2] sm:$0x1]
        %v560 = vperm.slane %v559, 0
        %v561 = vmul.f32 %v558, %v560
        %v562 = vld [vmem:[#allocation11 + $0x3] sm:$0x1]
        %v563 = vperm.slane %v562, 0
        %v564 = vadd.f32 %v561, %v563
        %vm565 = vcmp.gt.f32.partialorder %v564, 0.0
        %v566 = vmul.f32 %v564, 0.01
        %v567 = vsel %vm565, %v564, %v566
        %v568 = vld [vmem:[#allocation10 + $0x50] sm:$0xff]
        %v569 = vld [vmem:[#allocation10 + $0x58] sm:$0xff]
        %v570 = vld [vmem:[#allocation10 + $0x60] sm:$0xff]
        %v571 = vld [vmem:[#allocation10 + $0x68] sm:$0xff]
        %v572 = vld [vmem:[#allocation10 + $0x70] sm:$0xff]
        %v573 = vld [vmem:[#allocation10 + $0x78] sm:$0xff]
        %v574 = vld [vmem:[#allocation10 + $0x80] sm:$0xff]
        %v575 = vld [vmem:[#allocation10 + $0x88] sm:$0xff]
        %v576 = vld [vmem:[#allocation11 + $0x4] sm:$0x1]
        %v577 = vperm.slane %v576, 0
        %v579 = vsel %vm521, %v567, 0
        %581 = vmatpush.msra.mxu0 0.0
        %582 = vmatpush.msra.mxu0 0.0
        %583 = vmatpush.msra.mxu0 0.0
        %584 = vmatpush.msra.mxu0 0.0
        %585 = vmatpush.msra.mxu0 0.0
        %586 = vmatpush.msra.mxu0 0.0
        %587 = vmatpush.msra.mxu0 0.0
        %588 = vmatpush.msra.mxu0 0.0
        %589 = vmatpush.msra.mxu0 %v575
        %590 = vmatpush.msra.mxu0 %v574
        %591 = vmatpush.msra.mxu0 %v573
        %592 = vmatpush.msra.mxu0 %v572
        %593 = vmatpush.msra.mxu0 %v571
        %594 = vmatpush.msra.mxu0 %v570
        %595 = vmatpush.msra.mxu0 %v569
        %596 = vmatpush.msra.mxu0 %v568
        %597 = vmatmul.f32.gmra.mxu0 %v579
        %v598 = vpop.f32.mrf.mxu0
        %v599 = vadd.f32 %v577, %v598
        %600 = vdwg.mxu0
        %v601 = vmax.f32 %v599, -6.214608
        %v602 = vmul.f32 %v601, 0.5
        %v603 = vmul.f32 %v602, 1.442695
        %v604 = vpow.pop %v603
        %v605 = vmul.f32 %v604, %v399
        %607 = vrot.lane.b32.xlu0 %v605, 8
        %v608 = vpop.permute.xlu0 %607
        %v610 = vadd.f32 %v599, %v608
        %v611 = vld [vmem:[#allocation10 + $0x90] sm:$0xff]
        %613 = vrot.lane.b32.xlu0 %v610, 120
        %v614 = vpop.permute.xlu0 %613
        %vm615 = vcmask 64512
        %v616 = vsel %vm615, %v614, 0
        %618 = vmatpush.msra.mxu0 0.0
        %619 = vmatpush.msra.mxu0 0.0
        %620 = vmatpush.msra.mxu0 0.0
        %621 = vmatpush.msra.mxu0 0.0
        %622 = vmatpush.msra.mxu0 0.0
        %623 = vmatpush.msra.mxu0 0.0
        %624 = vmatpush.msra.mxu0 0.0
        %625 = vmatpush.msra.mxu0 0.0
        %626 = vmatpush.msra.mxu0 0.0
        %627 = vmatpush.msra.mxu0 0.0
        %628 = vmatpush.msra.mxu0 0.0
        %629 = vmatpush.msra.mxu0 0.0
        %630 = vmatpush.msra.mxu0 0.0
        %631 = vmatpush.msra.mxu0 0.0
        %632 = vmatpush.msra.mxu0 0.0
        %633 = vmatpush.msra.mxu0 %v611
        %634 = vmatmul.f32.gmra.mxu0 %v616
        %v635 = vpop.f32.mrf.mxu0
        %v636 = vadd.f32 0.0, %v635
        %637 = vdwg.mxu0
        %639 = vrot.lane.b32.xlu0 %v636, 32
        %v640 = vpop.permute.xlu0 %639
        %v642 = vadd.f32 %v457, %v640
        %v643 = vmax.f32 %v642, 0.0
        %v644 = vld [vmem:[#allocation10 + $0x98] sm:$0xff]
        %v645 = vld [vmem:[#allocation10 + $0xa0] sm:$0xff]
        %v646 = vld [vmem:[#allocation10 + $0xa8] sm:$0xff]
        %v647 = vld [vmem:[#allocation10 + $0xb0] sm:$0xff]
        %v648 = vld [vmem:[#allocation11 + $0x5] sm:$0x1]
        %v649 = vperm.slane %v648, 0
        %651 = vrot.lane.b32.xlu0 %v643, 96
        %v652 = vpop.permute.xlu0 %651
        %v653 = vsel %vm489, %v652, 0
        %655 = vmatpush.msra.mxu0 0.0
        %656 = vmatpush.msra.mxu0 0.0
        %657 = vmatpush.msra.mxu0 0.0
        %658 = vmatpush.msra.mxu0 0.0
        %659 = vmatpush.msra.mxu0 0.0
        %660 = vmatpush.msra.mxu0 0.0
        %661 = vmatpush.msra.mxu0 0.0
        %662 = vmatpush.msra.mxu0 0.0
        %663 = vmatpush.msra.mxu0 0.0
        %664 = vmatpush.msra.mxu0 0.0
        %665 = vmatpush.msra.mxu0 0.0
        %666 = vmatpush.msra.mxu0 0.0
        %667 = vmatpush.msra.mxu0 %v647
        %668 = vmatpush.msra.mxu0 %v646
        %669 = vmatpush.msra.mxu0 %v645
        %670 = vmatpush.msra.mxu0 %v644
        %671 = vmatmul.f32.gmra.mxu0 %v653
        %v672 = vpop.f32.mrf.mxu0
        %v673 = vadd.f32 %v649, %v672
        %674 = vdwg.mxu0
        %v675 = vadd.f32 %v673, %v515
        %v676 = vxor.u32 %v675, 2147483648
        %v677 = vmul.f32 %v676, 1.442695
        %v678 = vpow.pop %v677
        %v679 = vadd.f32 %v678, 1.0
        %v680 = vrcp.pop %v679
        %v681 = vmul.f32 %v679, %v680
        %v682 = vsub.f32 1.0, %v681
        %v683 = vmul.f32 %v680, %v682
        %v684 = vadd.f32 %v680, %v683
        %vm685 = vweird.f32 %v679
        %vm686 = vweird.f32 %v680
        %vm687 = vmor %vm685, %vm686
        %v688 = vsel %vm687, %v680, %v684
        %v689 = vand.u32 2147483647, %v679
        %vm690 = vcmp.eq.f32.partialorder %v689, 8.507059e+37
        %v691 = vand.u32 %v679, 2147483648
        %v692 = vor.u32 1.1754944e-38, %v691
        %v693 = vsel %vm690, %v692, %v688
        %v694 = vmul.f32 1.0, %v693
        %v695 = vmul.f32 %v694, %v518
        %697 = vrot.lane.b32.xlu0 %v695, 64
        %v698 = vpop.permute.xlu0 %697
        %v700 = vadd.f32 %v673, %v698
        %v701 = vtanh.pop %v700
        %v702 = vsub.f32 1.0, %v694
        %704 = vrot.lane.b32.xlu0 %v701, 96
        %v705 = vpop.permute.xlu0 %704
        %v707 = vmul.f32 %v702, %v705
        %708 = vrot.lane.b32.xlu0 %v400, 32
        %v709 = vpop.permute.xlu0 %708
        %v711 = vmul.f32 %v694, %v709
        %v712 = vadd.f32 %v707, %v711
        %714 = vrot.lane.b32.xlu0 %v712, 96
        %v715 = vpop.permute.xlu0 %714
        %717 = vst.msk [vmem:[#allocation2] sm:$0xff] %vm489, %v715
        %v718 = vld [vmem:[#allocation10 + $0xb8] sm:$0xff]
        %v719 = vld [vmem:[#allocation10 + $0xc0] sm:$0xff]
        %v720 = vld [vmem:[#allocation10 + $0xc8] sm:$0xff]
        %v721 = vld [vmem:[#allocation10 + $0xd0] sm:$0xff]
        %v722 = vld [vmem:[#allocation11 + $0x6] sm:$0x1]
        %v723 = vperm.slane %v722, 0
        %v724 = vsel %vm489, %v715, 0
        %726 = vmatpush.msra.mxu0 0.0
        %727 = vmatpush.msra.mxu0 0.0
        %728 = vmatpush.msra.mxu0 0.0
        %729 = vmatpush.msra.mxu0 0.0
        %730 = vmatpush.msra.mxu0 0.0
        %731 = vmatpush.msra.mxu0 0.0
        %732 = vmatpush.msra.mxu0 0.0
        %733 = vmatpush.msra.mxu0 0.0
        %734 = vmatpush.msra.mxu0 0.0
        %735 = vmatpush.msra.mxu0 0.0
        %736 = vmatpush.msra.mxu0 0.0
        %737 = vmatpush.msra.mxu0 0.0
        %738 = vmatpush.msra.mxu0 %v721
        %739 = vmatpush.msra.mxu0 %v720
        %740 = vmatpush.msra.mxu0 %v719
        %741 = vmatpush.msra.mxu0 %v718
        %742 = vmatmul.f32.gmra.mxu0 %v724
        %v743 = vpop.f32.mrf.mxu0
        %v744 = vadd.f32 %v723, %v743
        %745 = vdwg.mxu0
        %v746 = vmul.f32 %v604, %v604
        %v747 = vsel %vm615, %v601, 0.0
        %748 = vadd.xlane.f32.xlu0 %v747
        %v749 = vpop.xlane.xlu0 %748
        %v750 = vrot.slane %v749, 4
        %v751 = vadd.f32 %v749, %v750
        %v752 = vrot.slane %v751, 2
        %v753 = vadd.f32 %v751, %v752
        %v754 = vrot.slane %v753, 1
        %v755 = vadd.f32 %v753, %v754
        %s756 = vtos %v755
        %s757 = smul.f32 %s756, 0.5
        %s758 = sadd.f32 %s757, 90.812065
        %760 = vrot.lane.b32.xlu0 %v599, 112
        %v761 = vpop.permute.xlu0 %760
        %v763 = vsub.f32 %v599, %v761
        %765 = vrot.lane.b32.xlu0 %v601, 16
        %v766 = vpop.permute.xlu0 %765
        %v768 = vsub.f32 %v601, %v766
        %v769 = vmul.f32 %v768, 0.5
        %v770 = vmul.f32 %v763, %v763
        %772 = vrot.lane.b32.xlu0 %v770, 120
        %v773 = vpop.permute.xlu0 %772
        %v775 = vadd.f32 %v746, %v773
        %v776 = vsub.f32 0.0, %v601
        %v777 = vmul.f32 %v776, 1.442695
        %v778 = vpow.pop %v777
        %v779 = vmul.f32 %v778, 0.5
        %781 = vrot.lane.b32.xlu0 %v779, 112
        %v782 = vpop.permute.xlu0 %781
        %v784 = vmul.f32 %v775, %v782
        %786 = vrot.lane.b32.xlu0 %v784, 16
        %v787 = vpop.permute.xlu0 %786
        %v789 = vadd.f32 %v769, %v787
        %v790 = vsub.f32 %v789, 0.5
        %s791 = smul.f32 %s758, 0.001
        %793 = vrot.lane.b32.xlu0 %v790, 112
        %v794 = vpop.permute.xlu0 %793
        %v796 = vsel %vm615, %v794, 0.0
        %797 = vadd.xlane.f32.xlu0 %v796
        %v798 = vpop.xlane.xlu0 %797
        %v799 = vrot.slane %v798, 4
        %v800 = vadd.f32 %v798, %v799
        %v801 = vrot.slane %v800, 2
        %v802 = vadd.f32 %v800, %v801
        %v803 = vrot.slane %v802, 1
        %v804 = vadd.f32 %v802, %v803
        %s805 = vtos %v804
        %s806 = smul.f32 %s805, 0.0001
        %s807 = sadd.f32 %s791, %s806
        %s808 = smul.f32 %s807, 0.125
        %v809 = vld [vmem:[#allocation10 + $0xd8] sm:$0xf]
        %v812 = vsel %vm615, %v809, 0
        %814 = vmatpush.msra.mxu0 0.0
        %815 = vmatpush.msra.mxu0 0.0
        %816 = vmatpush.msra.mxu0 0.0
        %817 = vmatpush.msra.mxu0 0.0
        %818 = vmatpush.msra.mxu0 0.0
        %819 = vmatpush.msra.mxu0 0.0
        %820 = vmatpush.msra.mxu0 0.0
        %821 = vmatpush.msra.mxu0 0.0
        %822 = vmatpush.msra.mxu0 0.0
        %823 = vmatpush.msra.mxu0 0.0
        %824 = vmatpush.msra.mxu0 0.0
        %825 = vmatpush.msra.mxu0 0.0
        %826 = vmatpush.msra.mxu0 0.0
        %827 = vmatpush.msra.mxu0 0.0
        %828 = vmatpush.msra.mxu0 0.0
        %829 = vmatpush.msra.mxu0 %v614
        %830 = vmatmul.f32.gmra.mxu0 %v812
        %v831 = vpop.f32.mrf.mxu0
        %v832 = vadd.f32 0.0, %v831
        %833 = vdwg.mxu0
        %v834 = vmul.f32 %v610, %v610
        %836 = vrot.lane.b32.xlu0 %v834, 120
        %v837 = vpop.permute.xlu0 %836
        %839 = vmatpush.msra.mxu0 0.0
        %840 = vmatpush.msra.mxu0 0.0
        %841 = vmatpush.msra.mxu0 0.0
        %842 = vmatpush.msra.mxu0 0.0
        %843 = vmatpush.msra.mxu0 0.0
        %844 = vmatpush.msra.mxu0 0.0
        %845 = vmatpush.msra.mxu0 0.0
        %846 = vmatpush.msra.mxu0 0.0
        %847 = vmatpush.msra.mxu0 0.0
        %848 = vmatpush.msra.mxu0 0.0
        %849 = vmatpush.msra.mxu0 0.0
        %850 = vmatpush.msra.mxu0 0.0
        %851 = vmatpush.msra.mxu0 0.0
        %852 = vmatpush.msra.mxu0 0.0
        %853 = vmatpush.msra.mxu0 0.0
        %854 = vmatpush.msra.mxu0 %v837
        %855 = vmatmul.f32.gmra.mxu0 %v812
        %v856 = vpop.f32.mrf.mxu0
        %v857 = vadd.f32 0.0, %v856
        %858 = vdwg.mxu0
        %v859 = vmul.f32 %v857, 4.0
        %v860 = vmul.f32 %v832, 2.0
        %v861 = vmul.f32 %v860, %v832
        %v862 = vsub.f32 %v859, %v861
        %vm863 = vcmask 60416
        %v864 = vsel %vm863, %v862, 0.0
        %865 = vadd.xlane.f32.xlu0 %v864
        %v866 = vpop.xlane.xlu0 %865
        %v867 = vrot.slane %v866, 4
        %v868 = vadd.f32 %v866, %v867
        %v869 = vrot.slane %v868, 2
        %v870 = vadd.f32 %v868, %v869
        %v871 = vrot.slane %v870, 1
        %v872 = vadd.f32 %v870, %v871
        %s873 = vtos %v872
        %s874 = smul.f32 %s873, 0.015625
        %s875 = smul.f32 %s874, 0.001
        %s876 = sadd.f32 %s808, %s875
        %v877 = vlaneseq
        %v878 = vand.u32 %v877, 127
        %vm879 = vcmp.eq.s32.totalorder %v878, 38
        %v880 = vstv %s876
        %v881 = vsel %vm879, %v880, %v744
        %882 = vst [vmem:[%s389] sm:$0xff] %v881
        %p883 = scmp.lt.s32.totalorder %s25, 7
        %s884 = scalar_select %p883, %s25, 7
        %s885 = smul.addr %s884, 8
        %s886 = scalar_lea.vmem %s6, %s885
        // Predicated region
        $region73: #{rnn_agent_rollout.1} parent=43 // pred_check
          %p887 = pneg %p184
        $region74: #{rnn_agent_rollout.1} parent=43 // pred_check_branch
          %889 = sbr.rel (%p887) target = $region76
        $region75: #{rnn_agent_rollout.1} parent=43 // pred_region
          _
        $region76: #{rnn_agent_rollout.1} parent=43 // pred_fallthru
          _
      $region44: #{rnn_agent_rollout.1} parent=5 // pred_fallthru
        _
      %p890 = scmp.le.s32.totalorder 2, %s20
      // Predicated region
      $region77: #{rnn_agent_rollout.1} parent=5 // pred_check
        %p891 = pneg %p890
      $region78: #{rnn_agent_rollout.1} parent=5 // pred_check_branch
        %893 = sbr.rel (%p891) target = $region80
      $region79: #{rnn_agent_rollout.1} parent=5 // pred_region
        %s894 = ssub.s32 %s20, 2
        // Predicated region
        $region81: #{rnn_agent_rollout.1} parent=79 // pred_check
          %p895 = pneg %p190
        $region82: #{rnn_agent_rollout.1} parent=79 // pred_check_branch
          %897 = sbr.rel (%p895) target = $region84
        $region83: #{rnn_agent_rollout.1} parent=79 // pred_region
          %p898 = scmp.lt.s32.totalorder %s26, 7
          %s899 = scalar_select %p898, %s26, 7
          %s900 = smul.addr %s899, 8
          %s901 = scalar_lea.vmem %s6, %s900
        $region84: #{rnn_agent_rollout.1} parent=79 // pred_fallthru
          _
      $region80: #{rnn_agent_rollout.1} parent=5 // pred_fallthru
        _
    $region6: #{rnn_agent_rollout.1} parent=1 // loop_footer
      %s24 = sadd.s32 1, %s20
    $region7: #{rnn_agent_rollout.1} parent=1 // loop_footer_branch
      %19 = sbr.rel target = $region3
    $region8: #{rnn_agent_rollout.1} parent=1 // loop_exit
      _
    %902 = vsyncpa [#allocation4], 1
    %s903 = scalar_lea.sflag [#allocation4], 1
    %904 = vsyncpa %s903, 1
    %905 = vsyncpa [#allocation6], 1
    %s906 = scalar_lea.sflag [#allocation6], 1
    %907 = vsyncpa %s906, 1
    %908 = vsyncpa [#allocation9], 1
    %909 = vsyncpa [#allocation12], 1

</llo_original>
